<compile_context>
chip_gen: v7x
topology: tpu7x:2x2x1
jax: 0.10.0
libtpu: 0.0.40
codegen_flags: <defaults>
</compile_context>

<pallas_src>
import jax
import jax.numpy as jnp
from jax import lax
from jax.experimental import pallas as pl
from jax.experimental.pallas import tpu as pltpu


def _basicblock_kernel(x_ref, w1_ref, b1_ref, w2_ref, b2_ref, o_ref, pad_ref):
    """One batch element per grid step; everything lives in VMEM.

    x_ref  : (H, W, C)  f32   input tile (batch dim squeezed), NHWC
    w1_ref : (9*C, C)   bf16  conv1 3x3 weight as im2col matrix, BN1 scale folded
    b1_ref : (1, C)     f32   folded BN1 bias
    w2_ref : (9*C, C)   bf16  conv2 3x3 weight, BN2 scale folded
    b2_ref : (1, C)     f32   folded BN2 bias
    o_ref  : (H, W, C)  f32   output tile
    pad_ref: (H+2, W+2, C) f32 zero-padded conv-input scratch
    """
    H, W, C = x_ref.shape
    HW = H * W

    # Zero the scratch once; both convs only overwrite its interior rows, so
    # the 1-pixel halo stays zero (== the conv's padding=1).
    pad_ref[...] = jnp.zeros(pad_ref.shape, pad_ref.dtype)

    def stage(v_hwc):
        # Write rows 1..H of the scratch at full (W+2) width; the side columns
        # of zeros are built in registers so the store starts at sublane 0.
        zcol = jnp.zeros((H, 1, C), jnp.float32)
        pad_ref[pl.ds(1, H), :, :] = jnp.concatenate([zcol, v_hwc, zcol], axis=1)

    def conv3x3(w_ref):
        # Accumulate over the 3 kernel rows: per dy, one (HW, 3*C) LHS slab
        # (the three dx taps concatenated on the lane axis) against the
        # matching (3*C, C) weight rows.  K = 3*C = 384 per dot.
        acc = jnp.zeros((HW, C), jnp.float32)
        for dy in range(3):
            taps = [pad_ref[pl.ds(dy, H), pl.ds(dx, W), :] for dx in range(3)]
            lhs = jnp.concatenate(taps, axis=-1).reshape(HW, 3 * C)
            rhs = w_ref[pl.ds(dy * 3 * C, 3 * C), :]
            acc += jnp.dot(lhs.astype(jnp.bfloat16), rhs,
                           preferred_element_type=jnp.float32)
        return acc

    # conv1 (3x3, pad 1) + bn1 + relu
    stage(x_ref[...])
    y1 = jnp.maximum(conv3x3(w1_ref) + b1_ref[...], 0.0)        # (HW, C) f32

    # conv2 (3x3, pad 1) + bn2
    stage(y1.reshape(H, W, C))
    y2 = conv3x3(w2_ref) + b2_ref[...]

    # residual add (downsample=None -> identity = x) + relu.  x is re-read
    # from VMEM here instead of being kept live across both convs.
    out = jnp.maximum(y2 + x_ref[...].reshape(HW, C), 0.0)
    o_ref[...] = out.reshape(H, W, C)


def basicblock_pallas(x_nhwc, w1m, b1, w2m, b2):
    N, H, W, C = x_nhwc.shape
    P = w1m.shape[1]
    assert C == P, "stride=1, downsample=None requires inplanes == planes"
    assert w1m.shape[0] == 9 * C and w2m.shape == (9 * P, P)

    m_total = N * H * W
    cost = pl.CostEstimate(
        flops=4 * m_total * 9 * C * C,            # two 3x3 convs (2*M*K*N each)
        transcendentals=0,
        bytes_accessed=(2 * m_total * C * 4       # x in + out (f32)
                        + 2 * 9 * C * C * 2       # bf16 weight matrices
                        + 2 * C * 4))             # biases

    return pl.pallas_call(
        _basicblock_kernel,
        out_shape=jax.ShapeDtypeStruct((N, H, W, P), jnp.float32),
        grid_spec=pltpu.PrefetchScalarGridSpec(
            num_scalar_prefetch=0,
            grid=(N,),                                        # one image per step
            in_specs=[
                pl.BlockSpec((None, H, W, C), lambda n: (n, 0, 0, 0)),
                pl.BlockSpec((9 * C, P), lambda n: (0, 0)),    # resident weights
                pl.BlockSpec((1, P), lambda n: (0, 0)),
                pl.BlockSpec((9 * P, P), lambda n: (0, 0)),
                pl.BlockSpec((1, P), lambda n: (0, 0)),
            ],
            out_specs=pl.BlockSpec((None, H, W, P), lambda n: (n, 0, 0, 0)),
            scratch_shapes=[pltpu.VMEM((H + 2, W + 2, C), jnp.float32)],
        ),
        compiler_params=pltpu.CompilerParams(
            dimension_semantics=("parallel",),                 # 2 TCs on v7x
            vmem_limit_bytes=32 * 1024 * 1024,
        ),
        cost_estimate=cost,
    )(x_nhwc, w1m, b1, w2m, b2)


def _prep_conv_bn(w_torch, gamma, beta, mean, var, eps=1e-5):
    """Fold inference BatchNorm into the conv and build the im2col weight matrix.

    w_torch: (O, I, 3, 3) PyTorch conv weight.
    Returns (w_mat[bf16], bias[f32]):
      w_mat[(dy*3 + dx)*I + i, o] = w_torch[o, i, dy, dx] * scale[o]
    matching the kernel's tap ordering (dy row-band, then dx, then channel).
    """
    scale = gamma / jnp.sqrt(var + eps)                 # (O,)
    bias = beta - mean * scale                          # (O,)
    w_hwio = jnp.transpose(w_torch, (2, 3, 1, 0))       # (3, 3, I, O)
    kI = w_hwio.shape[2]
    w_mat = w_hwio.reshape(9 * kI, w_hwio.shape[3]) * scale[None, :]
    return w_mat.astype(jnp.bfloat16), bias[None, :].astype(jnp.float32)


def _reference_jax(x_nhwc, w1_t, w2_t, bn1, bn2, eps=1e-5):
    """Plain-JAX NHWC reference of the unfolded PyTorch forward pass (f32)."""
    dn = ("NHWC", "HWIO", "NHWC")

    def bn(y, p):
        gamma, beta, mean, var = p
        return (y - mean) / jnp.sqrt(var + eps) * gamma + beta

    w1 = jnp.transpose(w1_t, (2, 3, 1, 0))
    w2 = jnp.transpose(w2_t, (2, 3, 1, 0))
    y = lax.conv_general_dilated(x_nhwc, w1, (1, 1), ((1, 1), (1, 1)),
                                 dimension_numbers=dn,
                                 precision=lax.Precision.HIGHEST)
    y = jax.nn.relu(bn(y, bn1))
    y = lax.conv_general_dilated(y, w2, (1, 1), ((1, 1), (1, 1)),
                                 dimension_numbers=dn,
                                 precision=lax.Precision.HIGHEST)
    y = bn(y, bn2)
    return jax.nn.relu(y + x_nhwc)


if __name__ == "__main__":
    key = jax.random.PRNGKey(0)
    # BasicBlock(inplanes=128, planes=128): stride=1, downsample=None.
    # 128 channels keeps NHWC lane-dense (last dim == 128) on the TPU.
    N, H, W = 2, 8, 8
    planes = 128
    inplanes = planes

    ks = jax.random.split(key, 8)
    # Logical PyTorch input is NCHW; the kernel works in NHWC.
    x_nchw = jax.random.normal(ks[0], (N, inplanes, H, W), jnp.float32)
    x_nhwc = jnp.transpose(x_nchw, (0, 2, 3, 1))

    # Conv weights in PyTorch (O, I, kh, kw) layout.
    w1_t = jax.random.normal(ks[1], (planes, inplanes, 3, 3), jnp.float32) * 0.03
    w2_t = jax.random.normal(ks[2], (planes, planes, 3, 3), jnp.float32) * 0.03

    # BatchNorm params (inference mode, deterministic running stats).
    def bn_params(k, c):
        kg, kb, km, kv = jax.random.split(k, 4)
        gamma = 1.0 + 0.1 * jax.random.normal(kg, (c,), jnp.float32)
        beta = 0.1 * jax.random.normal(kb, (c,), jnp.float32)
        mean = 0.1 * jax.random.normal(km, (c,), jnp.float32)
        var = jax.nn.softplus(jax.random.normal(kv, (c,), jnp.float32)) + 0.5
        return gamma, beta, mean, var

    bn1 = bn_params(ks[3], planes)
    bn2 = bn_params(ks[4], planes)

    # Fold BN scale into the (bf16) im2col weight matrices (wrapper-side, free).
    w1m, b1 = _prep_conv_bn(w1_t, *bn1)
    w2m, b2 = _prep_conv_bn(w2_t, *bn2)

    out = basicblock_pallas(x_nhwc, w1m, b1, w2m, b2)
    out = jax.block_until_ready(out)

    ref = _reference_jax(x_nhwc, w1_t, w2_t, bn1, bn2)
    assert out.shape == (N, H, W, planes)
    max_err = float(jnp.max(jnp.abs(out - ref)))
    # bf16 matmul operands vs. an f32 HIGHEST-precision reference.
    assert jnp.allclose(out, ref, atol=5e-2, rtol=5e-2), max_err
    print("KERNEL_OK")
</pallas_src>

<mosaic_0001>
module attributes {stable_mosaic.version = 11 : i64} {
  func.func @_basicblock_kernel(%arg0: i32, %arg1: memref<1x8x8x128xf32, #tpu.memory_space<vmem>>, %arg2: memref<1152x128xbf16, #tpu.memory_space<vmem>>, %arg3: memref<1x128xf32, #tpu.memory_space<vmem>>, %arg4: memref<1152x128xbf16, #tpu.memory_space<vmem>>, %arg5: memref<1x128xf32, #tpu.memory_space<vmem>>, %arg6: memref<1x8x8x128xf32, #tpu.memory_space<vmem>>, %arg7: memref<10x10x128xf32, #tpu.memory_space<vmem>>) attributes {dimension_semantics = [#tpu.dimension_semantics<parallel>], iteration_bounds = array<i64: 2>, scalar_prefetch = 0 : i64, scratch_operands = 1 : i64, tpu.core_type = #tpu.core_type<tc>, window_params = [{transform_indices = @transform_0, window_bounds = array<i64: 1, 8, 8, 128>}, {pipeline_mode = #tpu.pipeline_mode<synchronous>, transform_indices = @transform_1, window_bounds = array<i64: 1152, 128>}, {pipeline_mode = #tpu.pipeline_mode<synchronous>, transform_indices = @transform_2, window_bounds = array<i64: 1, 128>}, {pipeline_mode = #tpu.pipeline_mode<synchronous>, transform_indices = @transform_3, window_bounds = array<i64: 1152, 128>}, {pipeline_mode = #tpu.pipeline_mode<synchronous>, transform_indices = @transform_4, window_bounds = array<i64: 1, 128>}, {transform_indices = @transform_5, window_bounds = array<i64: 1, 8, 8, 128>}]} {
    %cst = arith.constant 0.000000e+00 : f32
    %0 = vector.broadcast %cst : f32 to vector<10x10x128xf32>
    %c0 = arith.constant 0 : index
    %c0_0 = arith.constant 0 : index
    %c0_1 = arith.constant 0 : index
    %1 = vector.load %arg7[%c0, %c0_0, %c0_1] : memref<10x10x128xf32, #tpu.memory_space<vmem>>, vector<10x10x128xf32>
    tpu.vector_store %arg7[%c0, %c0_0, %c0_1], %0 {strides = array<i32>} : memref<10x10x128xf32, #tpu.memory_space<vmem>>, vector<10x10x128xf32>,
    %c0_2 = arith.constant 0 : index
    %c0_3 = arith.constant 0 : index
    %c0_4 = arith.constant 0 : index
    %c0_5 = arith.constant 0 : index
    %2 = vector.load %arg1[%c0_2, %c0_3, %c0_4, %c0_5] : memref<1x8x8x128xf32, #tpu.memory_space<vmem>>, vector<1x8x8x128xf32>
    %3 = vector.shape_cast %2 : vector<1x8x8x128xf32> to vector<8x8x128xf32>
    %cst_6 = arith.constant 0.000000e+00 : f32
    %4 = vector.broadcast %cst_6 : f32 to vector<8x1x128xf32>
    %5 = tpu.concatenate %4, %3, %4 in 1 : vector<8x1x128xf32>, vector<8x8x128xf32>, vector<8x1x128xf32> -> vector<8x10x128xf32>
    %c1 = arith.constant 1 : index
    %c0_7 = arith.constant 0 : index
    %c0_8 = arith.constant 0 : index
    %6 = vector.load %arg7[%c1, %c0_7, %c0_8] : memref<10x10x128xf32, #tpu.memory_space<vmem>>, vector<8x10x128xf32>
    tpu.vector_store %arg7[%c1, %c0_7, %c0_8], %5 {strides = array<i32>} : memref<10x10x128xf32, #tpu.memory_space<vmem>>, vector<8x10x128xf32>,
    %cst_9 = arith.constant 0.000000e+00 : f32
    %7 = vector.broadcast %cst_9 : f32 to vector<64x128xf32>
    %c0_10 = arith.constant 0 : index
    %c0_11 = arith.constant 0 : index
    %c0_12 = arith.constant 0 : index
    %8 = vector.load %arg7[%c0_10, %c0_11, %c0_12] : memref<10x10x128xf32, #tpu.memory_space<vmem>>, vector<8x8x128xf32>
    %c0_13 = arith.constant 0 : index
    %c1_14 = arith.constant 1 : index
    %c0_15 = arith.constant 0 : index
    %9 = vector.load %arg7[%c0_13, %c1_14, %c0_15] : memref<10x10x128xf32, #tpu.memory_space<vmem>>, vector<8x8x128xf32>
    %c0_16 = arith.constant 0 : index
    %c2 = arith.constant 2 : index
    %c0_17 = arith.constant 0 : index
    %10 = vector.load %arg7[%c0_16, %c2, %c0_17] : memref<10x10x128xf32, #tpu.memory_space<vmem>>, vector<8x8x128xf32>
    %11 = tpu.concatenate %8, %9, %10 in 2 : vector<8x8x128xf32>, vector<8x8x128xf32>, vector<8x8x128xf32> -> vector<8x8x384xf32>
    %12 = vector.shape_cast %11 : vector<8x8x384xf32> to vector<64x384xf32>
    %c0_18 = arith.constant 0 : index
    %c0_19 = arith.constant 0 : index
    %13 = vector.load %arg2[%c0_18, %c0_19] : memref<1152x128xbf16, #tpu.memory_space<vmem>>, vector<384x128xbf16>
    %14 = arith.truncf %12 : vector<64x384xf32> to vector<64x384xbf16>
    %cst_20 = arith.constant dense<0.000000e+00> : vector<64x128xf32>
    %15 = tpu.matmul %14, %13, %cst_20 {dimension_numbers = #tpu.dot_dimension_numbers<[1], [0], [0], [1], [0, 0, 1, 1], [], []>} : vector<64x384xbf16>, vector<384x128xbf16>, vector<64x128xf32> -> vector<64x128xf32>
    %16 = arith.addf %7, %15 : vector<64x128xf32>
    %c1_21 = arith.constant 1 : index
    %c0_22 = arith.constant 0 : index
    %c0_23 = arith.constant 0 : index
    %17 = vector.load %arg7[%c1_21, %c0_22, %c0_23] : memref<10x10x128xf32, #tpu.memory_space<vmem>>, vector<8x8x128xf32>
    %c1_24 = arith.constant 1 : index
    %c1_25 = arith.constant 1 : index
    %c0_26 = arith.constant 0 : index
    %18 = vector.load %arg7[%c1_24, %c1_25, %c0_26] : memref<10x10x128xf32, #tpu.memory_space<vmem>>, vector<8x8x128xf32>
    %c1_27 = arith.constant 1 : index
    %c2_28 = arith.constant 2 : index
    %c0_29 = arith.constant 0 : index
    %19 = vector.load %arg7[%c1_27, %c2_28, %c0_29] : memref<10x10x128xf32, #tpu.memory_space<vmem>>, vector<8x8x128xf32>
    %20 = tpu.concatenate %17, %18, %19 in 2 : vector<8x8x128xf32>, vector<8x8x128xf32>, vector<8x8x128xf32> -> vector<8x8x384xf32>
    %21 = vector.shape_cast %20 : vector<8x8x384xf32> to vector<64x384xf32>
    %c384 = arith.constant 384 : index
    %c0_30 = arith.constant 0 : index
    %22 = vector.load %arg2[%c384, %c0_30] : memref<1152x128xbf16, #tpu.memory_space<vmem>>, vector<384x128xbf16>
    %23 = arith.truncf %21 : vector<64x384xf32> to vector<64x384xbf16>
    %cst_31 = arith.constant dense<0.000000e+00> : vector<64x128xf32>
    %24 = tpu.matmul %23, %22, %cst_31 {dimension_numbers = #tpu.dot_dimension_numbers<[1], [0], [0], [1], [0, 0, 1, 1], [], []>} : vector<64x384xbf16>, vector<384x128xbf16>, vector<64x128xf32> -> vector<64x128xf32>
    %25 = arith.addf %16, %24 : vector<64x128xf32>
    %c2_32 = arith.constant 2 : index
    %c0_33 = arith.constant 0 : index
    %c0_34 = arith.constant 0 : index
    %26 = vector.load %arg7[%c2_32, %c0_33, %c0_34] : memref<10x10x128xf32, #tpu.memory_space<vmem>>, vector<8x8x128xf32>
    %c2_35 = arith.constant 2 : index
    %c1_36 = arith.constant 1 : index
    %c0_37 = arith.constant 0 : index
    %27 = vector.load %arg7[%c2_35, %c1_36, %c0_37] : memref<10x10x128xf32, #tpu.memory_space<vmem>>, vector<8x8x128xf32>
    %c2_38 = arith.constant 2 : index
    %c2_39 = arith.constant 2 : index
    %c0_40 = arith.constant 0 : index
    %28 = vector.load %arg7[%c2_38, %c2_39, %c0_40] : memref<10x10x128xf32, #tpu.memory_space<vmem>>, vector<8x8x128xf32>
    %29 = tpu.concatenate %26, %27, %28 in 2 : vector<8x8x128xf32>, vector<8x8x128xf32>, vector<8x8x128xf32> -> vector<8x8x384xf32>
    %30 = vector.shape_cast %29 : vector<8x8x384xf32> to vector<64x384xf32>
    %c768 = arith.constant 768 : index
    %c0_41 = arith.constant 0 : index
    %31 = vector.load %arg2[%c768, %c0_41] : memref<1152x128xbf16, #tpu.memory_space<vmem>>, vector<384x128xbf16>
    %32 = arith.truncf %30 : vector<64x384xf32> to vector<64x384xbf16>
    %cst_42 = arith.constant dense<0.000000e+00> : vector<64x128xf32>
    %33 = tpu.matmul %32, %31, %cst_42 {dimension_numbers = #tpu.dot_dimension_numbers<[1], [0], [0], [1], [0, 0, 1, 1], [], []>} : vector<64x384xbf16>, vector<384x128xbf16>, vector<64x128xf32> -> vector<64x128xf32>
    %34 = arith.addf %25, %33 : vector<64x128xf32>
    %c0_43 = arith.constant 0 : index
    %c0_44 = arith.constant 0 : index
    %35 = vector.load %arg3[%c0_43, %c0_44] : memref<1x128xf32, #tpu.memory_space<vmem>>, vector<1x128xf32>
    %36 = vector.broadcast %35 : vector<1x128xf32> to vector<64x128xf32>
    %37 = arith.addf %34, %36 : vector<64x128xf32>
    %cst_45 = arith.constant 0.000000e+00 : f32
    %38 = vector.broadcast %cst_45 : f32 to vector<64x128xf32>
    %39 = arith.maximumf %37, %38 : vector<64x128xf32>
    %40 = vector.shape_cast %39 : vector<64x128xf32> to vector<8x8x128xf32>
    %cst_46 = arith.constant 0.000000e+00 : f32
    %41 = vector.broadcast %cst_46 : f32 to vector<8x1x128xf32>
    %42 = tpu.concatenate %41, %40, %41 in 1 : vector<8x1x128xf32>, vector<8x8x128xf32>, vector<8x1x128xf32> -> vector<8x10x128xf32>
    %c1_47 = arith.constant 1 : index
    %c0_48 = arith.constant 0 : index
    %c0_49 = arith.constant 0 : index
    %43 = vector.load %arg7[%c1_47, %c0_48, %c0_49] : memref<10x10x128xf32, #tpu.memory_space<vmem>>, vector<8x10x128xf32>
    tpu.vector_store %arg7[%c1_47, %c0_48, %c0_49], %42 {strides = array<i32>} : memref<10x10x128xf32, #tpu.memory_space<vmem>>, vector<8x10x128xf32>,
    %cst_50 = arith.constant 0.000000e+00 : f32
    %44 = vector.broadcast %cst_50 : f32 to vector<64x128xf32>
    %c0_51 = arith.constant 0 : index
    %c0_52 = arith.constant 0 : index
    %c0_53 = arith.constant 0 : index
    %45 = vector.load %arg7[%c0_51, %c0_52, %c0_53] : memref<10x10x128xf32, #tpu.memory_space<vmem>>, vector<8x8x128xf32>
    %c0_54 = arith.constant 0 : index
    %c1_55 = arith.constant 1 : index
    %c0_56 = arith.constant 0 : index
    %46 = vector.load %arg7[%c0_54, %c1_55, %c0_56] : memref<10x10x128xf32, #tpu.memory_space<vmem>>, vector<8x8x128xf32>
    %c0_57 = arith.constant 0 : index
    %c2_58 = arith.constant 2 : index
    %c0_59 = arith.constant 0 : index
    %47 = vector.load %arg7[%c0_57, %c2_58, %c0_59] : memref<10x10x128xf32, #tpu.memory_space<vmem>>, vector<8x8x128xf32>
    %48 = tpu.concatenate %45, %46, %47 in 2 : vector<8x8x128xf32>, vector<8x8x128xf32>, vector<8x8x128xf32> -> vector<8x8x384xf32>
    %49 = vector.shape_cast %48 : vector<8x8x384xf32> to vector<64x384xf32>
    %c0_60 = arith.constant 0 : index
    %c0_61 = arith.constant 0 : index
    %50 = vector.load %arg4[%c0_60, %c0_61] : memref<1152x128xbf16, #tpu.memory_space<vmem>>, vector<384x128xbf16>
    %51 = arith.truncf %49 : vector<64x384xf32> to vector<64x384xbf16>
    %cst_62 = arith.constant dense<0.000000e+00> : vector<64x128xf32>
    %52 = tpu.matmul %51, %50, %cst_62 {dimension_numbers = #tpu.dot_dimension_numbers<[1], [0], [0], [1], [0, 0, 1, 1], [], []>} : vector<64x384xbf16>, vector<384x128xbf16>, vector<64x128xf32> -> vector<64x128xf32>
    %53 = arith.addf %44, %52 : vector<64x128xf32>
    %c1_63 = arith.constant 1 : index
    %c0_64 = arith.constant 0 : index
    %c0_65 = arith.constant 0 : index
    %54 = vector.load %arg7[%c1_63, %c0_64, %c0_65] : memref<10x10x128xf32, #tpu.memory_space<vmem>>, vector<8x8x128xf32>
    %c1_66 = arith.constant 1 : index
    %c1_67 = arith.constant 1 : index
    %c0_68 = arith.constant 0 : index
    %55 = vector.load %arg7[%c1_66, %c1_67, %c0_68] : memref<10x10x128xf32, #tpu.memory_space<vmem>>, vector<8x8x128xf32>
    %c1_69 = arith.constant 1 : index
    %c2_70 = arith.constant 2 : index
    %c0_71 = arith.constant 0 : index
    %56 = vector.load %arg7[%c1_69, %c2_70, %c0_71] : memref<10x10x128xf32, #tpu.memory_space<vmem>>, vector<8x8x128xf32>
    %57 = tpu.concatenate %54, %55, %56 in 2 : vector<8x8x128xf32>, vector<8x8x128xf32>, vector<8x8x128xf32> -> vector<8x8x384xf32>
    %58 = vector.shape_cast %57 : vector<8x8x384xf32> to vector<64x384xf32>
    %c384_72 = arith.constant 384 : index
    %c0_73 = arith.constant 0 : index
    %59 = vector.load %arg4[%c384_72, %c0_73] : memref<1152x128xbf16, #tpu.memory_space<vmem>>, vector<384x128xbf16>
    %60 = arith.truncf %58 : vector<64x384xf32> to vector<64x384xbf16>
    %cst_74 = arith.constant dense<0.000000e+00> : vector<64x128xf32>
    %61 = tpu.matmul %60, %59, %cst_74 {dimension_numbers = #tpu.dot_dimension_numbers<[1], [0], [0], [1], [0, 0, 1, 1], [], []>} : vector<64x384xbf16>, vector<384x128xbf16>, vector<64x128xf32> -> vector<64x128xf32>
    %62 = arith.addf %53, %61 : vector<64x128xf32>
    %c2_75 = arith.constant 2 : index
    %c0_76 = arith.constant 0 : index
    %c0_77 = arith.constant 0 : index
    %63 = vector.load %arg7[%c2_75, %c0_76, %c0_77] : memref<10x10x128xf32, #tpu.memory_space<vmem>>, vector<8x8x128xf32>
    %c2_78 = arith.constant 2 : index
    %c1_79 = arith.constant 1 : index
    %c0_80 = arith.constant 0 : index
    %64 = vector.load %arg7[%c2_78, %c1_79, %c0_80] : memref<10x10x128xf32, #tpu.memory_space<vmem>>, vector<8x8x128xf32>
    %c2_81 = arith.constant 2 : index
    %c2_82 = arith.constant 2 : index
    %c0_83 = arith.constant 0 : index
    %65 = vector.load %arg7[%c2_81, %c2_82, %c0_83] : memref<10x10x128xf32, #tpu.memory_space<vmem>>, vector<8x8x128xf32>
    %66 = tpu.concatenate %63, %64, %65 in 2 : vector<8x8x128xf32>, vector<8x8x128xf32>, vector<8x8x128xf32> -> vector<8x8x384xf32>
    %67 = vector.shape_cast %66 : vector<8x8x384xf32> to vector<64x384xf32>
    %c768_84 = arith.constant 768 : index
    %c0_85 = arith.constant 0 : index
    %68 = vector.load %arg4[%c768_84, %c0_85] : memref<1152x128xbf16, #tpu.memory_space<vmem>>, vector<384x128xbf16>
    %69 = arith.truncf %67 : vector<64x384xf32> to vector<64x384xbf16>
    %cst_86 = arith.constant dense<0.000000e+00> : vector<64x128xf32>
    %70 = tpu.matmul %69, %68, %cst_86 {dimension_numbers = #tpu.dot_dimension_numbers<[1], [0], [0], [1], [0, 0, 1, 1], [], []>} : vector<64x384xbf16>, vector<384x128xbf16>, vector<64x128xf32> -> vector<64x128xf32>
    %71 = arith.addf %62, %70 : vector<64x128xf32>
    %c0_87 = arith.constant 0 : index
    %c0_88 = arith.constant 0 : index
    %72 = vector.load %arg5[%c0_87, %c0_88] : memref<1x128xf32, #tpu.memory_space<vmem>>, vector<1x128xf32>
    %73 = vector.broadcast %72 : vector<1x128xf32> to vector<64x128xf32>
    %74 = arith.addf %71, %73 : vector<64x128xf32>
    %c0_89 = arith.constant 0 : index
    %c0_90 = arith.constant 0 : index
    %c0_91 = arith.constant 0 : index
    %c0_92 = arith.constant 0 : index
    %75 = vector.load %arg1[%c0_89, %c0_90, %c0_91, %c0_92] : memref<1x8x8x128xf32, #tpu.memory_space<vmem>>, vector<1x8x8x128xf32>
    %76 = vector.shape_cast %75 : vector<1x8x8x128xf32> to vector<8x8x128xf32>
    %77 = vector.shape_cast %76 : vector<8x8x128xf32> to vector<64x128xf32>
    %78 = arith.addf %74, %77 : vector<64x128xf32>
    %cst_93 = arith.constant 0.000000e+00 : f32
    %79 = vector.broadcast %cst_93 : f32 to vector<64x128xf32>
    %80 = arith.maximumf %78, %79 : vector<64x128xf32>
    %81 = vector.shape_cast %80 : vector<64x128xf32> to vector<8x8x128xf32>
    %c0_94 = arith.constant 0 : index
    %c0_95 = arith.constant 0 : index
    %c0_96 = arith.constant 0 : index
    %c0_97 = arith.constant 0 : index
    %82 = vector.load %arg6[%c0_94, %c0_95, %c0_96, %c0_97] : memref<1x8x8x128xf32, #tpu.memory_space<vmem>>, vector<1x8x8x128xf32>
    %83 = vector.shape_cast %82 : vector<1x8x8x128xf32> to vector<8x8x128xf32>
    %84 = vector.shape_cast %81 : vector<8x8x128xf32> to vector<1x8x8x128xf32>
    tpu.vector_store %arg6[%c0_94, %c0_95, %c0_96, %c0_97], %84 {strides = array<i32>} : memref<1x8x8x128xf32, #tpu.memory_space<vmem>>, vector<1x8x8x128xf32>,
    return
  }
  func.func @transform_0(%arg0: i32) -> (i32, i32, i32, i32) {
    %c0_i32 = arith.constant 0 : i32
    %c0_i32_0 = arith.constant 0 : i32
    %c0_i32_1 = arith.constant 0 : i32
    %c0_i32_2 = arith.constant 0 : i32
    return %arg0, %c0_i32, %c0_i32_0, %c0_i32_1 : i32, i32, i32, i32
  }
  func.func @transform_1(%arg0: i32) -> (i32, i32) {
    %c0_i32 = arith.constant 0 : i32
    %c0_i32_0 = arith.constant 0 : i32
    %c0_i32_1 = arith.constant 0 : i32
    return %c0_i32, %c0_i32_0 : i32, i32
  }
  func.func @transform_2(%arg0: i32) -> (i32, i32) {
    %c0_i32 = arith.constant 0 : i32
    %c0_i32_0 = arith.constant 0 : i32
    %c0_i32_1 = arith.constant 0 : i32
    return %c0_i32, %c0_i32_0 : i32, i32
  }
  func.func @transform_3(%arg0: i32) -> (i32, i32) {
    %c0_i32 = arith.constant 0 : i32
    %c0_i32_0 = arith.constant 0 : i32
    %c0_i32_1 = arith.constant 0 : i32
    return %c0_i32, %c0_i32_0 : i32, i32
  }
  func.func @transform_4(%arg0: i32) -> (i32, i32) {
    %c0_i32 = arith.constant 0 : i32
    %c0_i32_0 = arith.constant 0 : i32
    %c0_i32_1 = arith.constant 0 : i32
    return %c0_i32, %c0_i32_0 : i32, i32
  }
  func.func @transform_5(%arg0: i32) -> (i32, i32, i32, i32) {
    %c0_i32 = arith.constant 0 : i32
    %c0_i32_0 = arith.constant 0 : i32
    %c0_i32_1 = arith.constant 0 : i32
    %c0_i32_2 = arith.constant 0 : i32
    return %arg0, %c0_i32, %c0_i32_0, %c0_i32_1 : i32, i32, i32, i32
  }
}

</mosaic_0001>

<llo_original>
// kernel: tpu_custom_call.1
$region0: #{tpu_custom_call.1}
  #allocation0 [shape = 'u32[]', space=smem, size = 0x4, offset = 0x4, fixed_abs, tag = 'smem constant byte address 0x4 - core index']
  #allocation1 [shape = 'u32[144,128]{1,0:T(1,128)}', space=vmem, size = 0x12000, scoped, tag = 'internal scratch']
  #allocation2 [shape = 'f32[10,10,128]{2,1,0:T(8,128)}', space=vmem, size = 0x14000, scoped, tag = 'scratch operand']
  %s0 = inlined_call_operand.hbm [shape: f32[2,8,8,128], index: 0, kind: input, shape index: {}]
  %s1 = inlined_call_operand.hbm [shape: bf16[1152,128], index: 1, kind: input, shape index: {}]
  %s2 = inlined_call_operand.vmem [shape: f32[1,128], index: 2, kind: input, shape index: {}]
  %s3 = inlined_call_operand.hbm [shape: bf16[1152,128], index: 3, kind: input, shape index: {}]
  %s4 = inlined_call_operand.vmem [shape: f32[1,128], index: 4, kind: input, shape index: {}]
  %s5 = inlined_call_operand.hbm [shape: f32[2,8,8,128], index: 5, kind: output, shape index: {}]
  %s6 = sld [smem:[#allocation0]]
  $region65: #{tpu_custom_call.1} parent=0
    _
  %s8 = ssub.s32 1, %s6
  %s9 = scalar_select 0, %s8, %s6
  $region1: #{tpu_custom_call.1} parent=0
    #allocation3 [shape = 'u8[65536]{0}', space=vmem, size = 0x10000, scoped, tag = 'input window, operand 0']
    #allocation4 [shape = 's32[2]{0}', space=sflag, size = 0x8, scoped, tag = 'scoped memory for tpu_custom_call.1']
    #allocation5 [shape = 's32[2]{0}', space=sflag, size = 0x8, scoped, tag = 'scoped memory for tpu_custom_call.1']
    #allocation6 [shape = 'u8[294912]{0}', space=vmem, size = 0x48000, scoped, tag = 'input window, operand 1, single buffered']
    #allocation7 [shape = 's32[1]{0}', space=sflag, size = 0x4, scoped, tag = 'scoped memory for tpu_custom_call.1']
    #allocation8 [shape = 'u8[294912]{0}', space=vmem, size = 0x48000, scoped, tag = 'input window, operand 3, single buffered']
    #allocation9 [shape = 'u8[65536]{0}', space=vmem, size = 0x10000, scoped, tag = 'output window, operand 0']
    %10 = vsyncpa [#allocation4], 0
    %s11 = scalar_lea.sflag [#allocation4], 1
    %12 = vsyncpa %s11, 0
    %13 = vsyncpa [#allocation7], 0
    %14 = vsyncpa [#allocation5], 0
    %s15 = scalar_lea.sflag [#allocation5], 1
    %16 = vsyncpa %s15, 0
    loop: start=0, step=1, limit=4
    $region2: #{tpu_custom_call.1} parent=1 // loop_pre_header
      _
    $region3: #{tpu_custom_call.1} parent=1 // loop_header
      %s18 = sphi 0, %s22
      %p19 = scmp.ge.s32.totalorder %s18, 4
      %s28 = sphi 0, %s30
      %s31 = sphi 0, %s28
      %s32 = sphi 0, %s31
      %s48 = sphi 0, %s32
      %s52 = sphi 0, %s52
      %s54 = sphi 0, %s52
      %s55 = sphi 0, %s54
      %s69 = sphi 0, %s55
      %s73 = sphi 0, %s73
      %s75 = sphi 0, %s73
      %s76 = sphi 0, %s75
      %s90 = sphi 0, %s76
      %s94 = sphi 0, %s94
      %s96 = sphi 0, %s94
      %s97 = sphi 0, %s96
      %s111 = sphi 0, %s97
      %s115 = sphi 0, %s115
      %s117 = sphi 0, %s115
      %s118 = sphi 0, %s117
      %s132 = sphi 0, %s118
      %s138 = sphi 0, %s140
      %s141 = sphi 0, %s138
      %s142 = sphi 0, %s141
      %s158 = sphi 0, %s142
    $region4: #{tpu_custom_call.1} parent=1 // loop_header_branch
      %21 = sbr.rel (%p19) target = $region8
    $region5: #{tpu_custom_call.1} parent=1 // loop_body
      %s23 = ssub.s32 %s18, 1
      %s24 = ssub.s32 %s18, 2
      %s25 = sadd.s32 %s18, 1
      %s26 = ssub.s32 %s18, %s25
      %p27 = scmp.eq.s32.totalorder %s26, 0
      %s29 = sadd.s32 %s28, 1
      %s30 = scalar_select %p27, %s28, %s29
      %p33 = pneg %p27
      %p34 = scmp.eq.s32.totalorder %s18, 1
      %p35 = por %p33, %p34
      %p36 = scmp.ne.s32.totalorder %s28, %s31
      %p37 = scmp.eq.s32.totalorder %s18, 0
      %p38 = por %p36, %p37
      %p39 = scmp.ne.s32.totalorder %s28, %s31
      %p40 = scmp.eq.s32.totalorder %s23, 1
      %p41 = por %p39, %p40
      %p42 = scmp.ne.s32.totalorder %s31, %s32
      %p43 = scmp.eq.s32.totalorder %s23, 0
      %p44 = por %p42, %p43
      %p45 = scmp.ne.s32.totalorder %s31, %s32
      %p46 = scmp.eq.s32.totalorder %s24, 1
      %p47 = por %p45, %p46
      %p49 = scmp.ne.s32.totalorder %s32, %s48
      %p50 = scmp.eq.s32.totalorder %s24, 0
      %p51 = por %p49, %p50
      %s53 = sadd.s32 %s52, 1
      %p56 = scmp.eq.s32.totalorder %s18, 1
      %p57 = scmp.ne.s32.totalorder %s52, %s54
      %p58 = scmp.eq.s32.totalorder %s18, 0
      %p59 = por %p57, %p58
      %p60 = scmp.ne.s32.totalorder %s52, %s54
      %p61 = scmp.eq.s32.totalorder %s23, 1
      %p62 = por %p60, %p61
      %p63 = scmp.ne.s32.totalorder %s54, %s55
      %p64 = scmp.eq.s32.totalorder %s23, 0
      %p65 = por %p63, %p64
      %p66 = scmp.ne.s32.totalorder %s54, %s55
      %p67 = scmp.eq.s32.totalorder %s24, 1
      %p68 = por %p66, %p67
      %p70 = scmp.ne.s32.totalorder %s55, %s69
      %p71 = scmp.eq.s32.totalorder %s24, 0
      %p72 = por %p70, %p71
      %s74 = sadd.s32 %s73, 1
      %p77 = scmp.eq.s32.totalorder %s18, 1
      %p78 = scmp.ne.s32.totalorder %s73, %s75
      %p79 = scmp.eq.s32.totalorder %s18, 0
      %p80 = por %p78, %p79
      %p81 = scmp.ne.s32.totalorder %s73, %s75
      %p82 = scmp.eq.s32.totalorder %s23, 1
      %p83 = por %p81, %p82
      %p84 = scmp.ne.s32.totalorder %s75, %s76
      %p85 = scmp.eq.s32.totalorder %s23, 0
      %p86 = por %p84, %p85
      %p87 = scmp.ne.s32.totalorder %s75, %s76
      %p88 = scmp.eq.s32.totalorder %s24, 1
      %p89 = por %p87, %p88
      %p91 = scmp.ne.s32.totalorder %s76, %s90
      %p92 = scmp.eq.s32.totalorder %s24, 0
      %p93 = por %p91, %p92
      %s95 = sadd.s32 %s94, 1
      %p98 = scmp.eq.s32.totalorder %s18, 1
      %p99 = scmp.ne.s32.totalorder %s94, %s96
      %p100 = scmp.eq.s32.totalorder %s18, 0
      %p101 = por %p99, %p100
      %p102 = scmp.ne.s32.totalorder %s94, %s96
      %p103 = scmp.eq.s32.totalorder %s23, 1
      %p104 = por %p102, %p103
      %p105 = scmp.ne.s32.totalorder %s96, %s97
      %p106 = scmp.eq.s32.totalorder %s23, 0
      %p107 = por %p105, %p106
      %p108 = scmp.ne.s32.totalorder %s96, %s97
      %p109 = scmp.eq.s32.totalorder %s24, 1
      %p110 = por %p108, %p109
      %p112 = scmp.ne.s32.totalorder %s97, %s111
      %p113 = scmp.eq.s32.totalorder %s24, 0
      %p114 = por %p112, %p113
      %s116 = sadd.s32 %s115, 1
      %p119 = scmp.eq.s32.totalorder %s18, 1
      %p120 = scmp.ne.s32.totalorder %s115, %s117
      %p121 = scmp.eq.s32.totalorder %s18, 0
      %p122 = por %p120, %p121
      %p123 = scmp.ne.s32.totalorder %s115, %s117
      %p124 = scmp.eq.s32.totalorder %s23, 1
      %p125 = por %p123, %p124
      %p126 = scmp.ne.s32.totalorder %s117, %s118
      %p127 = scmp.eq.s32.totalorder %s23, 0
      %p128 = por %p126, %p127
      %p129 = scmp.ne.s32.totalorder %s117, %s118
      %p130 = scmp.eq.s32.totalorder %s24, 1
      %p131 = por %p129, %p130
      %p133 = scmp.ne.s32.totalorder %s118, %s132
      %p134 = scmp.eq.s32.totalorder %s24, 0
      %p135 = por %p133, %p134
      %s136 = ssub.s32 %s18, %s25
      %p137 = scmp.eq.s32.totalorder %s136, 0
      %s139 = sadd.s32 %s138, 1
      %s140 = scalar_select %p137, %s138, %s139
      %p143 = pneg %p137
      %p144 = scmp.eq.s32.totalorder %s18, 1
      %p145 = por %p143, %p144
      %p146 = scmp.ne.s32.totalorder %s138, %s141
      %p147 = scmp.eq.s32.totalorder %s18, 0
      %p148 = por %p146, %p147
      %p149 = scmp.ne.s32.totalorder %s138, %s141
      %p150 = scmp.eq.s32.totalorder %s23, 1
      %p151 = por %p149, %p150
      %p152 = scmp.ne.s32.totalorder %s141, %s142
      %p153 = scmp.eq.s32.totalorder %s23, 0
      %p154 = por %p152, %p153
      %p155 = scmp.ne.s32.totalorder %s141, %s142
      %p156 = scmp.eq.s32.totalorder %s24, 1
      %p157 = por %p155, %p156
      %p159 = scmp.ne.s32.totalorder %s142, %s158
      %p160 = scmp.eq.s32.totalorder %s24, 0
      %p161 = por %p159, %p160
      %p162 = scmp.le.s32.totalorder 1, %s18
      %p163 = scmp.lt.s32.totalorder %s18, 3
      %p164 = pnand %p162, %p163
      %p165 = pneg %p164
      // Predicated region
      $region9: #{tpu_custom_call.1} parent=5 // pred_check
        _
      $region10: #{tpu_custom_call.1} parent=5 // pred_check_branch
        %167 = sbr.rel (%p164) target = $region12
      $region11: #{tpu_custom_call.1} parent=5 // pred_region
        %s168 = ssub.s32 %s18, 1
        // Predicated region
        $region13: #{tpu_custom_call.1} parent=11 // pred_check
          %p169 = pneg %p65
        $region14: #{tpu_custom_call.1} parent=11 // pred_check_branch
          %171 = sbr.rel (%p169) target = $region16
        $region15: #{tpu_custom_call.1} parent=11 // pred_region
          %s173 = ssub.s32 9216, 9216
          %174 = vsyncadd [#allocation7], %s173
          %s175 = sshll.u32 [#allocation6], 4
          %s176 = int_to_ptr.vmem [resolvable:$true] %s175
          %181 = dma.hbm_to_vmem [thread:$0]  %s1, 9216, %s176, [#allocation7], 64, 64, 4
        $region16: #{tpu_custom_call.1} parent=11 // pred_fallthru
          _
        // Predicated region
        $region17: #{tpu_custom_call.1} parent=11 // pred_check
          %p182 = pneg %p86
        $region18: #{tpu_custom_call.1} parent=11 // pred_check_branch
          %184 = sbr.rel (%p182) target = $region20
        $region19: #{tpu_custom_call.1} parent=11 // pred_region
          _
        $region20: #{tpu_custom_call.1} parent=11 // pred_fallthru
          _
        // Predicated region
        $region21: #{tpu_custom_call.1} parent=11 // pred_check
          %p185 = pneg %p107
        $region22: #{tpu_custom_call.1} parent=11 // pred_check_branch
          %187 = sbr.rel (%p185) target = $region24
        $region23: #{tpu_custom_call.1} parent=11 // pred_region
          %s189 = ssub.s32 9216, 9216
          %190 = vsyncadd [#allocation7], %s189
          %s191 = sshll.u32 [#allocation8], 4
          %s192 = int_to_ptr.vmem [resolvable:$true] %s191
          %197 = dma.hbm_to_vmem [thread:$0]  %s3, 9216, %s192, [#allocation7], 64, 64, 4
        $region24: #{tpu_custom_call.1} parent=11 // pred_fallthru
          _
        // Predicated region
        $region25: #{tpu_custom_call.1} parent=11 // pred_check
          %p198 = pneg %p128
        $region26: #{tpu_custom_call.1} parent=11 // pred_check_branch
          %200 = sbr.rel (%p198) target = $region28
        $region27: #{tpu_custom_call.1} parent=11 // pred_region
          _
        $region28: #{tpu_custom_call.1} parent=11 // pred_fallthru
          _
      $region12: #{tpu_custom_call.1} parent=5 // pred_fallthru
        _
      %p201 = scmp.lt.s32.totalorder %s18, 2
      // Predicated region
      $region29: #{tpu_custom_call.1} parent=5 // pred_check
        %p202 = pneg %p201
      $region30: #{tpu_custom_call.1} parent=5 // pred_check_branch
        %204 = sbr.rel (%p202) target = $region32
      $region31: #{tpu_custom_call.1} parent=5 // pred_region
        // Predicated region
        $region33: #{tpu_custom_call.1} parent=31 // pred_check
          %p205 = pneg %p38
        $region34: #{tpu_custom_call.1} parent=31 // pred_check_branch
          %207 = sbr.rel (%p205) target = $region36
        $region35: #{tpu_custom_call.1} parent=31 // pred_region
          %s208 = sand.u32 %s28, 1
          %s209 = scalar_lea.sflag [#allocation4], %s208
          %s210 = sand.u32 %s28, 1
          %s211 = smul.addr %s210, 64
          %s212 = scalar_lea.vmem [#allocation3], %s211
          %s214 = ssub.s32 1024, 1024
          %215 = vsyncadd %s209, %s214
          %s216 = smul.addr %s18, 8
          %s217 = smul.addr %s216, 128
          %s218 = scalar_lea.hbm %s0, %s217
          %s219 = sshll.u32 %s212, 4
          %s220 = int_to_ptr.vmem [resolvable:$true] %s219
          %225 = dma.hbm_to_vmem [thread:$0]  %s218, 1024, %s220, %s209, 128, 128, 8
        $region36: #{tpu_custom_call.1} parent=31 // pred_fallthru
          _
      $region32: #{tpu_custom_call.1} parent=5 // pred_fallthru
        _
      %p226 = scmp.le.s32.totalorder 1, %s18
      %p227 = scmp.lt.s32.totalorder %s18, 3
      %p228 = pnand %p226, %p227
      %p229 = pneg %p228
      // Predicated region
      $region37: #{tpu_custom_call.1} parent=5 // pred_check
        _
      $region38: #{tpu_custom_call.1} parent=5 // pred_check_branch
        %231 = sbr.rel (%p228) target = $region40
      $region39: #{tpu_custom_call.1} parent=5 // pred_region
        %s232 = ssub.s32 %s18, 1
        %s233 = sand.u32 %s31, 1
        %s234 = scalar_lea.sflag [#allocation4], %s233
        %s235 = sand.u32 %s31, 1
        %s236 = smul.addr %s235, 64
        %s237 = scalar_lea.vmem [#allocation3], %s236
        // Predicated region
        $region41: #{tpu_custom_call.1} parent=39 // pred_check
          %p238 = pneg %p44
        $region42: #{tpu_custom_call.1} parent=39 // pred_check_branch
          %240 = sbr.rel (%p238) target = $region44
        $region43: #{tpu_custom_call.1} parent=39 // pred_region
          %241 = dma.done %s234, 1024
        $region44: #{tpu_custom_call.1} parent=39 // pred_fallthru
          _
        // Predicated region
        $region45: #{tpu_custom_call.1} parent=39 // pred_check
          %p242 = pneg %p65
        $region46: #{tpu_custom_call.1} parent=39 // pred_check_branch
          %244 = sbr.rel (%p242) target = $region48
        $region47: #{tpu_custom_call.1} parent=39 // pred_region
          %245 = dma.done [#allocation7], 9216
        $region48: #{tpu_custom_call.1} parent=39 // pred_fallthru
          _
        // Predicated region
        $region49: #{tpu_custom_call.1} parent=39 // pred_check
          %p246 = pneg %p107
        $region50: #{tpu_custom_call.1} parent=39 // pred_check_branch
          %248 = sbr.rel (%p246) target = $region52
        $region51: #{tpu_custom_call.1} parent=39 // pred_region
          %249 = dma.done [#allocation7], 9216
        $region52: #{tpu_custom_call.1} parent=39 // pred_fallthru
          _
        %s250 = sand.u32 %s31, 1
        %s251 = scalar_lea.sflag [#allocation4], %s250
        %s252 = sand.u32 %s31, 1
        %s253 = smul.addr %s252, 64
        %s254 = scalar_lea.vmem [#allocation3], %s253
        %p255 = pneg %p44
        %p256 = pneg %p41
        %p257 = pneg %p65
        %p258 = pneg %p62
        %p259 = pneg %p86
        %p260 = pneg %p83
        %p261 = pneg %p107
        %p262 = pneg %p104
        %p263 = pneg %p128
        %p264 = pneg %p125
        %p265 = pneg %p154
        %p266 = pneg %p151
        %s267 = sand.u32 %s141, 1
        %s268 = scalar_lea.sflag [#allocation5], %s267
        %s269 = sand.u32 %s141, 1
        %s270 = smul.addr %s269, 64
        %s271 = scalar_lea.vmem [#allocation9], %s270
        %273 = vst [vmem:[#allocation2] sm:$0xff] 0.0
        %274 = vst [vmem:[#allocation2 + $0x8] sm:$0x3] 0.0
        %275 = vst [vmem:[#allocation2 + $0x10] sm:$0xff] 0.0
        %276 = vst [vmem:[#allocation2 + $0x18] sm:$0x3] 0.0
        %277 = vst [vmem:[#allocation2 + $0x20] sm:$0xff] 0.0
        %278 = vst [vmem:[#allocation2 + $0x28] sm:$0x3] 0.0
        %279 = vst [vmem:[#allocation2 + $0x30] sm:$0xff] 0.0
        %280 = vst [vmem:[#allocation2 + $0x38] sm:$0x3] 0.0
        %281 = vst [vmem:[#allocation2 + $0x40] sm:$0xff] 0.0
        %282 = vst [vmem:[#allocation2 + $0x48] sm:$0x3] 0.0
        %283 = vst [vmem:[#allocation2 + $0x50] sm:$0xff] 0.0
        %284 = vst [vmem:[#allocation2 + $0x58] sm:$0x3] 0.0
        %285 = vst [vmem:[#allocation2 + $0x60] sm:$0xff] 0.0
        %286 = vst [vmem:[#allocation2 + $0x68] sm:$0x3] 0.0
        %287 = vst [vmem:[#allocation2 + $0x70] sm:$0xff] 0.0
        %288 = vst [vmem:[#allocation2 + $0x78] sm:$0x3] 0.0
        %289 = vst [vmem:[#allocation2 + $0x80] sm:$0xff] 0.0
        %290 = vst [vmem:[#allocation2 + $0x88] sm:$0x3] 0.0
        %291 = vst [vmem:[#allocation2 + $0x90] sm:$0xff] 0.0
        %292 = vst [vmem:[#allocation2 + $0x98] sm:$0x3] 0.0
        %v293 = vld [vmem:[%s237] sm:$0xff]
        %v294 = vld [vmem:[%s237 + $0x8] sm:$0xff]
        %v295 = vld [vmem:[%s237 + $0x10] sm:$0xff]
        %v296 = vld [vmem:[%s237 + $0x18] sm:$0xff]
        %v297 = vld [vmem:[%s237 + $0x20] sm:$0xff]
        %v298 = vld [vmem:[%s237 + $0x28] sm:$0xff]
        %v299 = vld [vmem:[%s237 + $0x30] sm:$0xff]
        %v300 = vld [vmem:[%s237 + $0x38] sm:$0xff]
        %v309 = vrot.slane %v293, 7
        %v310 = vrot.slane %v294, 7
        %v311 = vrot.slane %v295, 7
        %v312 = vrot.slane %v296, 7
        %v313 = vrot.slane %v297, 7
        %v314 = vrot.slane %v298, 7
        %v315 = vrot.slane %v299, 7
        %v316 = vrot.slane %v300, 7
        %vm325 = vcmask 1040384
        %v326 = vsel %vm325, 0.0, %v309
        %v327 = vsel %vm325, 0.0, %v310
        %v328 = vsel %vm325, 0.0, %v311
        %v329 = vsel %vm325, 0.0, %v312
        %v330 = vsel %vm325, 0.0, %v313
        %v331 = vsel %vm325, 0.0, %v314
        %v332 = vsel %vm325, 0.0, %v315
        %v333 = vsel %vm325, 0.0, %v316
        %v334 = vsel %vm325, %v309, 0.0
        %v335 = vsel %vm325, %v310, 0.0
        %v336 = vsel %vm325, %v311, 0.0
        %v337 = vsel %vm325, %v312, 0.0
        %v338 = vsel %vm325, %v313, 0.0
        %v339 = vsel %vm325, %v314, 0.0
        %v340 = vsel %vm325, %v315, 0.0
        %v341 = vsel %vm325, %v316, 0.0
        %s342 = scalar_lea.vmem [#allocation2], 16
        %343 = vst [vmem:[%s342] sm:$0xff] %v326
        %344 = vst [vmem:[%s342 + $0x8] sm:$0x3] %v334
        %345 = vst [vmem:[%s342 + $0x10] sm:$0xff] %v327
        %346 = vst [vmem:[%s342 + $0x18] sm:$0x3] %v335
        %347 = vst [vmem:[%s342 + $0x20] sm:$0xff] %v328
        %348 = vst [vmem:[%s342 + $0x28] sm:$0x3] %v336
        %349 = vst [vmem:[%s342 + $0x30] sm:$0xff] %v329
        %350 = vst [vmem:[%s342 + $0x38] sm:$0x3] %v337
        %351 = vst [vmem:[%s342 + $0x40] sm:$0xff] %v330
        %352 = vst [vmem:[%s342 + $0x48] sm:$0x3] %v338
        %353 = vst [vmem:[%s342 + $0x50] sm:$0xff] %v331
        %354 = vst [vmem:[%s342 + $0x58] sm:$0x3] %v339
        %355 = vst [vmem:[%s342 + $0x60] sm:$0xff] %v332
        %356 = vst [vmem:[%s342 + $0x68] sm:$0x3] %v340
        %357 = vst [vmem:[%s342 + $0x70] sm:$0xff] %v333
        %358 = vst [vmem:[%s342 + $0x78] sm:$0x3] %v341
        %v359 = vld [vmem:[#allocation2] sm:$0xff]
        %v360 = vld [vmem:[#allocation2 + $0x10] sm:$0xff]
        %v361 = vld [vmem:[#allocation2 + $0x20] sm:$0xff]
        %v362 = vld [vmem:[#allocation2 + $0x30] sm:$0xff]
        %v363 = vld [vmem:[#allocation2 + $0x40] sm:$0xff]
        %v364 = vld [vmem:[#allocation2 + $0x50] sm:$0xff]
        %v365 = vld [vmem:[#allocation2 + $0x60] sm:$0xff]
        %v366 = vld [vmem:[#allocation2 + $0x70] sm:$0xff]
        %v367 = vld [vmem:[#allocation2 + $0x1] sm:$0xff]
        %v368 = vld [vmem:[#allocation2 + $0x11] sm:$0xff]
        %v369 = vld [vmem:[#allocation2 + $0x21] sm:$0xff]
        %v370 = vld [vmem:[#allocation2 + $0x31] sm:$0xff]
        %v371 = vld [vmem:[#allocation2 + $0x41] sm:$0xff]
        %v372 = vld [vmem:[#allocation2 + $0x51] sm:$0xff]
        %v373 = vld [vmem:[#allocation2 + $0x61] sm:$0xff]
        %v374 = vld [vmem:[#allocation2 + $0x71] sm:$0xff]
        %v375 = vld [vmem:[#allocation2 + $0x2] sm:$0xff]
        %v376 = vld [vmem:[#allocation2 + $0x12] sm:$0xff]
        %v377 = vld [vmem:[#allocation2 + $0x22] sm:$0xff]
        %v378 = vld [vmem:[#allocation2 + $0x32] sm:$0xff]
        %v379 = vld [vmem:[#allocation2 + $0x42] sm:$0xff]
        %v380 = vld [vmem:[#allocation2 + $0x52] sm:$0xff]
        %v381 = vld [vmem:[#allocation2 + $0x62] sm:$0xff]
        %v382 = vld [vmem:[#allocation2 + $0x72] sm:$0xff]
        %v383 = vld [vmem:[#allocation6] sm:$0xf]
        %v384 = vld [vmem:[#allocation6 + $0x4] sm:$0xf]
        %v385 = vld [vmem:[#allocation6 + $0x8] sm:$0xf]
        %v386 = vld [vmem:[#allocation6 + $0xc] sm:$0xf]
        %v387 = vld [vmem:[#allocation6 + $0x10] sm:$0xf]
        %v388 = vld [vmem:[#allocation6 + $0x14] sm:$0xf]
        %v389 = vld [vmem:[#allocation6 + $0x18] sm:$0xf]
        %v390 = vld [vmem:[#allocation6 + $0x1c] sm:$0xf]
        %v391 = vld [vmem:[#allocation6 + $0x20] sm:$0xf]
        %v392 = vld [vmem:[#allocation6 + $0x24] sm:$0xf]
        %v393 = vld [vmem:[#allocation6 + $0x28] sm:$0xf]
        %v394 = vld [vmem:[#allocation6 + $0x2c] sm:$0xf]
        %v395 = vld [vmem:[#allocation6 + $0x30] sm:$0xf]
        %v396 = vld [vmem:[#allocation6 + $0x34] sm:$0xf]
        %v397 = vld [vmem:[#allocation6 + $0x38] sm:$0xf]
        %v398 = vld [vmem:[#allocation6 + $0x3c] sm:$0xf]
        %v399 = vld [vmem:[#allocation6 + $0x40] sm:$0xf]
        %v400 = vld [vmem:[#allocation6 + $0x44] sm:$0xf]
        %v401 = vld [vmem:[#allocation6 + $0x48] sm:$0xf]
        %v402 = vld [vmem:[#allocation6 + $0x4c] sm:$0xf]
        %v403 = vld [vmem:[#allocation6 + $0x50] sm:$0xf]
        %v404 = vld [vmem:[#allocation6 + $0x54] sm:$0xf]
        %v405 = vld [vmem:[#allocation6 + $0x58] sm:$0xf]
        %v406 = vld [vmem:[#allocation6 + $0x5c] sm:$0xf]
        %v407 = vld [vmem:[#allocation6 + $0x60] sm:$0xf]
        %v408 = vld [vmem:[#allocation6 + $0x64] sm:$0xf]
        %v409 = vld [vmem:[#allocation6 + $0x68] sm:$0xf]
        %v410 = vld [vmem:[#allocation6 + $0x6c] sm:$0xf]
        %v411 = vld [vmem:[#allocation6 + $0x70] sm:$0xf]
        %v412 = vld [vmem:[#allocation6 + $0x74] sm:$0xf]
        %v413 = vld [vmem:[#allocation6 + $0x78] sm:$0xf]
        %v414 = vld [vmem:[#allocation6 + $0x7c] sm:$0xf]
        %v415 = vld [vmem:[#allocation6 + $0x80] sm:$0xf]
        %v416 = vld [vmem:[#allocation6 + $0x84] sm:$0xf]
        %v417 = vld [vmem:[#allocation6 + $0x88] sm:$0xf]
        %v418 = vld [vmem:[#allocation6 + $0x8c] sm:$0xf]
        %v419 = vld [vmem:[#allocation6 + $0x90] sm:$0xf]
        %v420 = vld [vmem:[#allocation6 + $0x94] sm:$0xf]
        %v421 = vld [vmem:[#allocation6 + $0x98] sm:$0xf]
        %v422 = vld [vmem:[#allocation6 + $0x9c] sm:$0xf]
        %v423 = vld [vmem:[#allocation6 + $0xa0] sm:$0xf]
        %v424 = vld [vmem:[#allocation6 + $0xa4] sm:$0xf]
        %v425 = vld [vmem:[#allocation6 + $0xa8] sm:$0xf]
        %v426 = vld [vmem:[#allocation6 + $0xac] sm:$0xf]
        %v427 = vld [vmem:[#allocation6 + $0xb0] sm:$0xf]
        %v428 = vld [vmem:[#allocation6 + $0xb4] sm:$0xf]
        %v429 = vld [vmem:[#allocation6 + $0xb8] sm:$0xf]
        %v430 = vld [vmem:[#allocation6 + $0xbc] sm:$0xf]
        %v431 = vpack.c.bf16 %v360, %v359
        %v432 = vpack.c.bf16 %v368, %v367
        %v433 = vpack.c.bf16 %v376, %v375
        %v434 = vpack.c.bf16 %v362, %v361
        %v435 = vpack.c.bf16 %v370, %v369
        %v436 = vpack.c.bf16 %v378, %v377
        %v437 = vpack.c.bf16 %v364, %v363
        %v438 = vpack.c.bf16 %v372, %v371
        %v439 = vpack.c.bf16 %v380, %v379
        %v440 = vpack.c.bf16 %v366, %v365
        %v441 = vpack.c.bf16 %v374, %v373
        %v442 = vpack.c.bf16 %v382, %v381
        %v443 = vld [vmem:[%s342] sm:$0xff]
        %v444 = vld [vmem:[%s342 + $0x10] sm:$0xff]
        %v445 = vld [vmem:[%s342 + $0x20] sm:$0xff]
        %v446 = vld [vmem:[%s342 + $0x30] sm:$0xff]
        %v447 = vld [vmem:[%s342 + $0x40] sm:$0xff]
        %v448 = vld [vmem:[%s342 + $0x50] sm:$0xff]
        %v449 = vld [vmem:[%s342 + $0x60] sm:$0xff]
        %v450 = vld [vmem:[%s342 + $0x70] sm:$0xff]
        %v451 = vld [vmem:[%s342 + $0x1] sm:$0xff]
        %v452 = vld [vmem:[%s342 + $0x11] sm:$0xff]
        %v453 = vld [vmem:[%s342 + $0x21] sm:$0xff]
        %v454 = vld [vmem:[%s342 + $0x31] sm:$0xff]
        %v455 = vld [vmem:[%s342 + $0x41] sm:$0xff]
        %v456 = vld [vmem:[%s342 + $0x51] sm:$0xff]
        %v457 = vld [vmem:[%s342 + $0x61] sm:$0xff]
        %v458 = vld [vmem:[%s342 + $0x71] sm:$0xff]
        %v459 = vld [vmem:[%s342 + $0x2] sm:$0xff]
        %v460 = vld [vmem:[%s342 + $0x12] sm:$0xff]
        %v461 = vld [vmem:[%s342 + $0x22] sm:$0xff]
        %v462 = vld [vmem:[%s342 + $0x32] sm:$0xff]
        %v463 = vld [vmem:[%s342 + $0x42] sm:$0xff]
        %v464 = vld [vmem:[%s342 + $0x52] sm:$0xff]
        %v465 = vld [vmem:[%s342 + $0x62] sm:$0xff]
        %v466 = vld [vmem:[%s342 + $0x72] sm:$0xff]
        %v467 = vld [vmem:[#allocation6 + $0xc0] sm:$0xf]
        %v468 = vld [vmem:[#allocation6 + $0xc4] sm:$0xf]
        %v469 = vld [vmem:[#allocation6 + $0xc8] sm:$0xf]
        %v470 = vld [vmem:[#allocation6 + $0xcc] sm:$0xf]
        %v471 = vld [vmem:[#allocation6 + $0xd0] sm:$0xf]
        %v472 = vld [vmem:[#allocation6 + $0xd4] sm:$0xf]
        %v473 = vld [vmem:[#allocation6 + $0xd8] sm:$0xf]
        %v474 = vld [vmem:[#allocation6 + $0xdc] sm:$0xf]
        %v475 = vld [vmem:[#allocation6 + $0xe0] sm:$0xf]
        %v476 = vld [vmem:[#allocation6 + $0xe4] sm:$0xf]
        %v477 = vld [vmem:[#allocation6 + $0xe8] sm:$0xf]
        %v478 = vld [vmem:[#allocation6 + $0xec] sm:$0xf]
        %v479 = vld [vmem:[#allocation6 + $0xf0] sm:$0xf]
        %v480 = vld [vmem:[#allocation6 + $0xf4] sm:$0xf]
        %v481 = vld [vmem:[#allocation6 + $0xf8] sm:$0xf]
        %v482 = vld [vmem:[#allocation6 + $0xfc] sm:$0xf]
        %v483 = vld [vmem:[#allocation6 + $0x100] sm:$0xf]
        %v484 = vld [vmem:[#allocation6 + $0x104] sm:$0xf]
        %v485 = vld [vmem:[#allocation6 + $0x108] sm:$0xf]
        %v486 = vld [vmem:[#allocation6 + $0x10c] sm:$0xf]
        %v487 = vld [vmem:[#allocation6 + $0x110] sm:$0xf]
        %v488 = vld [vmem:[#allocation6 + $0x114] sm:$0xf]
        %v489 = vld [vmem:[#allocation6 + $0x118] sm:$0xf]
        %v490 = vld [vmem:[#allocation6 + $0x11c] sm:$0xf]
        %v491 = vld [vmem:[#allocation6 + $0x120] sm:$0xf]
        %v492 = vld [vmem:[#allocation6 + $0x124] sm:$0xf]
        %v493 = vld [vmem:[#allocation6 + $0x128] sm:$0xf]
        %v494 = vld [vmem:[#allocation6 + $0x12c] sm:$0xf]
        %v495 = vld [vmem:[#allocation6 + $0x130] sm:$0xf]
        %v496 = vld [vmem:[#allocation6 + $0x134] sm:$0xf]
        %v497 = vld [vmem:[#allocation6 + $0x138] sm:$0xf]
        %v498 = vld [vmem:[#allocation6 + $0x13c] sm:$0xf]
        %v499 = vld [vmem:[#allocation6 + $0x140] sm:$0xf]
        %v500 = vld [vmem:[#allocation6 + $0x144] sm:$0xf]
        %v501 = vld [vmem:[#allocation6 + $0x148] sm:$0xf]
        %v502 = vld [vmem:[#allocation6 + $0x14c] sm:$0xf]
        %v503 = vld [vmem:[#allocation6 + $0x150] sm:$0xf]
        %v504 = vld [vmem:[#allocation6 + $0x154] sm:$0xf]
        %v505 = vld [vmem:[#allocation6 + $0x158] sm:$0xf]
        %v506 = vld [vmem:[#allocation6 + $0x15c] sm:$0xf]
        %v507 = vld [vmem:[#allocation6 + $0x160] sm:$0xf]
        %v508 = vld [vmem:[#allocation6 + $0x164] sm:$0xf]
        %v509 = vld [vmem:[#allocation6 + $0x168] sm:$0xf]
        %v510 = vld [vmem:[#allocation6 + $0x16c] sm:$0xf]
        %v511 = vld [vmem:[#allocation6 + $0x170] sm:$0xf]
        %v512 = vld [vmem:[#allocation6 + $0x174] sm:$0xf]
        %v513 = vld [vmem:[#allocation6 + $0x178] sm:$0xf]
        %v514 = vld [vmem:[#allocation6 + $0x17c] sm:$0xf]
        %v515 = vpack.c.bf16 %v444, %v443
        %v516 = vpack.c.bf16 %v452, %v451
        %v517 = vpack.c.bf16 %v460, %v459
        %v518 = vpack.c.bf16 %v446, %v445
        %v519 = vpack.c.bf16 %v454, %v453
        %v520 = vpack.c.bf16 %v462, %v461
        %v521 = vpack.c.bf16 %v448, %v447
        %v522 = vpack.c.bf16 %v456, %v455
        %v523 = vpack.c.bf16 %v464, %v463
        %v524 = vpack.c.bf16 %v450, %v449
        %v525 = vpack.c.bf16 %v458, %v457
        %v526 = vpack.c.bf16 %v466, %v465
        %v575 = vunpack.c.l.b16 %v467
        %v576 = vunpack.c.l.b16 %v468
        %v577 = vunpack.c.l.b16 %v469
        %v578 = vunpack.c.l.b16 %v470
        %v579 = vunpack.c.l.b16 %v471
        %v580 = vunpack.c.l.b16 %v472
        %v581 = vunpack.c.l.b16 %v473
        %v582 = vunpack.c.l.b16 %v474
        %v583 = vunpack.c.l.b16 %v475
        %v584 = vunpack.c.l.b16 %v476
        %v585 = vunpack.c.l.b16 %v477
        %v586 = vunpack.c.l.b16 %v478
        %v587 = vunpack.c.l.b16 %v479
        %v588 = vunpack.c.l.b16 %v480
        %v589 = vunpack.c.l.b16 %v481
        %v590 = vunpack.c.l.b16 %v482
        %v591 = vunpack.c.l.b16 %v483
        %v592 = vunpack.c.l.b16 %v484
        %v593 = vunpack.c.l.b16 %v485
        %v594 = vunpack.c.l.b16 %v486
        %v595 = vunpack.c.l.b16 %v487
        %v596 = vunpack.c.l.b16 %v488
        %v597 = vunpack.c.l.b16 %v489
        %v598 = vunpack.c.l.b16 %v490
        %v599 = vunpack.c.l.b16 %v491
        %v600 = vunpack.c.l.b16 %v492
        %v601 = vunpack.c.l.b16 %v493
        %v602 = vunpack.c.l.b16 %v494
        %v603 = vunpack.c.l.b16 %v495
        %v604 = vunpack.c.l.b16 %v496
        %v605 = vunpack.c.l.b16 %v497
        %v606 = vunpack.c.l.b16 %v498
        %v607 = vunpack.c.l.b16 %v499
        %v608 = vunpack.c.l.b16 %v500
        %v609 = vunpack.c.l.b16 %v501
        %v610 = vunpack.c.l.b16 %v502
        %v611 = vunpack.c.l.b16 %v503
        %v612 = vunpack.c.l.b16 %v504
        %v613 = vunpack.c.l.b16 %v505
        %v614 = vunpack.c.l.b16 %v506
        %v615 = vunpack.c.l.b16 %v507
        %v616 = vunpack.c.l.b16 %v508
        %v617 = vunpack.c.l.b16 %v509
        %v618 = vunpack.c.l.b16 %v510
        %v619 = vunpack.c.l.b16 %v511
        %v620 = vunpack.c.l.b16 %v512
        %v621 = vunpack.c.l.b16 %v513
        %v622 = vunpack.c.l.b16 %v514
        %v623 = vpack.c.b16 %v576, %v575
        %v624 = vpack.c.b16 %v578, %v577
        %v625 = vpack.c.b16 %v580, %v579
        %v626 = vpack.c.b16 %v582, %v581
        %v627 = vpack.c.b16 %v584, %v583
        %v628 = vpack.c.b16 %v586, %v585
        %v629 = vpack.c.b16 %v588, %v587
        %v630 = vpack.c.b16 %v590, %v589
        %v631 = vpack.c.b16 %v592, %v591
        %v632 = vpack.c.b16 %v594, %v593
        %v633 = vpack.c.b16 %v596, %v595
        %v634 = vpack.c.b16 %v598, %v597
        %v635 = vpack.c.b16 %v600, %v599
        %v636 = vpack.c.b16 %v602, %v601
        %v637 = vpack.c.b16 %v604, %v603
        %v638 = vpack.c.b16 %v606, %v605
        %v639 = vpack.c.b16 %v608, %v607
        %v640 = vpack.c.b16 %v610, %v609
        %v641 = vpack.c.b16 %v612, %v611
        %v642 = vpack.c.b16 %v614, %v613
        %v643 = vpack.c.b16 %v616, %v615
        %v644 = vpack.c.b16 %v618, %v617
        %v645 = vpack.c.b16 %v620, %v619
        %v646 = vpack.c.b16 %v622, %v621
        %671 = vmatprep.subr.bf16.mxu0 0
        %672 = vmatpush1.bf16.msra.mxu0 %v623
        %673 = vmatprep.subr.bf16.mxu0 0
        %674 = vmatpush1.bf16.msra.mxu0 %v624
        %675 = vmatprep.subr.bf16.mxu0 0
        %676 = vmatpush1.bf16.msra.mxu0 %v625
        %677 = vmatprep.subr.bf16.mxu0 0
        %678 = vmatpush1.bf16.msra.mxu0 %v626
        %679 = vmatprep.subr.bf16.mxu0 0
        %680 = vmatpush1.bf16.msra.mxu0 %v627
        %681 = vmatprep.subr.bf16.mxu0 0
        %682 = vmatpush1.bf16.msra.mxu0 %v628
        %683 = vmatprep.subr.bf16.mxu0 0
        %684 = vmatpush1.bf16.msra.mxu0 %v629
        %685 = vmatprep.subr.bf16.mxu0 0
        %686 = vmatpush1.bf16.msra.mxu0 %v630
        %687 = vmatprep.subr.bf16.mxu0 0
        %688 = vmatpush1.bf16.msra.mxu0 %v631
        %689 = vmatprep.subr.bf16.mxu0 0
        %690 = vmatpush1.bf16.msra.mxu0 %v632
        %691 = vmatprep.subr.bf16.mxu0 0
        %692 = vmatpush1.bf16.msra.mxu0 %v633
        %693 = vmatprep.subr.bf16.mxu0 0
        %694 = vmatpush1.bf16.msra.mxu0 %v634
        %695 = vmatprep.subr.bf16.mxu0 0
        %696 = vmatpush1.bf16.msra.mxu0 %v635
        %697 = vmatprep.subr.bf16.mxu0 0
        %698 = vmatpush1.bf16.msra.mxu0 %v636
        %699 = vmatprep.subr.bf16.mxu0 0
        %700 = vmatpush1.bf16.msra.mxu0 %v637
        %701 = vmatprep.subr.bf16.mxu0 0
        %702 = vmatpush1.bf16.msra.mxu0 %v638
        %703 = vmatprep.mubr.bf16.mxu0 %v516
        %704 = vmatmul.mubr.bf16.gmra.mrb[0].mxu0 %v515
        %v705 = vpop.f32.mrb[0].mxu0
        %v706 = vadd.f32 0.0, %v705
        %v707 = vpop.f32.mrb[0].mxu0
        %v708 = vpop.f32.mrb[0].mxu0
        %v709 = vadd.f32 0.0, %v708
        %v710 = vpop.f32.mrb[0].mxu0
        %711 = vmatprep.mubr.bf16.mxu0 %v519
        %712 = vmatmul.mubr.bf16.gmra.mrb[0].mxu0 %v518
        %v713 = vpop.f32.mrb[0].mxu0
        %v714 = vadd.f32 0.0, %v713
        %v715 = vpop.f32.mrb[0].mxu0
        %v716 = vpop.f32.mrb[0].mxu0
        %v717 = vadd.f32 0.0, %v716
        %v718 = vpop.f32.mrb[0].mxu0
        %719 = vmatprep.mubr.bf16.mxu0 %v522
        %720 = vmatmul.mubr.bf16.gmra.mrb[0].mxu0 %v521
        %v721 = vpop.f32.mrb[0].mxu0
        %v722 = vadd.f32 0.0, %v721
        %v723 = vpop.f32.mrb[0].mxu0
        %v724 = vpop.f32.mrb[0].mxu0
        %v725 = vadd.f32 0.0, %v724
        %v726 = vpop.f32.mrb[0].mxu0
        %727 = vmatprep.mubr.bf16.mxu0 %v525
        %728 = vmatmul.mubr.bf16.gmra.mrb[0].mxu0 %v524
        %v729 = vpop.f32.mrb[0].mxu0
        %v730 = vadd.f32 0.0, %v729
        %v731 = vpop.f32.mrb[0].mxu0
        %v732 = vpop.f32.mrb[0].mxu0
        %v733 = vadd.f32 0.0, %v732
        %v734 = vpop.f32.mrb[0].mxu0
        %735 = vdwg.mxu0
        %736 = vmatprep.subr.bf16.mxu0 0
        %737 = vmatpush1.bf16.msra.mxu0 %v639
        %738 = vmatprep.subr.bf16.mxu0 0
        %739 = vmatpush1.bf16.msra.mxu0 %v640
        %740 = vmatprep.subr.bf16.mxu0 0
        %741 = vmatpush1.bf16.msra.mxu0 %v641
        %742 = vmatprep.subr.bf16.mxu0 0
        %743 = vmatpush1.bf16.msra.mxu0 %v642
        %744 = vmatprep.subr.bf16.mxu0 0
        %745 = vmatpush1.bf16.msra.mxu0 %v643
        %746 = vmatprep.subr.bf16.mxu0 0
        %747 = vmatpush1.bf16.msra.mxu0 %v644
        %748 = vmatprep.subr.bf16.mxu0 0
        %749 = vmatpush1.bf16.msra.mxu0 %v645
        %750 = vmatprep.subr.bf16.mxu0 0
        %751 = vmatpush1.bf16.msra.mxu0 %v646
        %752 = vmatprep.subr.bf16.mxu0 0
        %753 = vmatpush1.bf16.msra.mxu0 0
        %754 = vmatprep.subr.bf16.mxu0 0
        %755 = vmatpush1.bf16.msra.mxu0 0
        %756 = vmatprep.subr.bf16.mxu0 0
        %757 = vmatpush1.bf16.msra.mxu0 0
        %758 = vmatprep.subr.bf16.mxu0 0
        %759 = vmatpush1.bf16.msra.mxu0 0
        %760 = vmatprep.subr.bf16.mxu0 0
        %761 = vmatpush1.bf16.msra.mxu0 0
        %762 = vmatprep.subr.bf16.mxu0 0
        %763 = vmatpush1.bf16.msra.mxu0 0
        %764 = vmatprep.subr.bf16.mxu0 0
        %765 = vmatpush1.bf16.msra.mxu0 0
        %766 = vmatprep.subr.bf16.mxu0 0
        %767 = vmatpush1.bf16.msra.mxu0 0
        %768 = vmatprep.mubr.bf16.mxu0 0
        %769 = vmatmul.mubr.bf16.gmra.mrb[0].mxu0 %v517
        %v770 = vpop.f32.mrb[0].mxu0
        %v771 = vadd.f32 %v706, %v770
        %v772 = vpop.f32.mrb[0].mxu0
        %v773 = vpop.f32.mrb[0].mxu0
        %v774 = vadd.f32 %v709, %v773
        %v775 = vpop.f32.mrb[0].mxu0
        %776 = vmatprep.mubr.bf16.mxu0 0
        %777 = vmatmul.mubr.bf16.gmra.mrb[0].mxu0 %v520
        %v778 = vpop.f32.mrb[0].mxu0
        %v779 = vadd.f32 %v714, %v778
        %v780 = vpop.f32.mrb[0].mxu0
        %v781 = vpop.f32.mrb[0].mxu0
        %v782 = vadd.f32 %v717, %v781
        %v783 = vpop.f32.mrb[0].mxu0
        %784 = vmatprep.mubr.bf16.mxu0 0
        %785 = vmatmul.mubr.bf16.gmra.mrb[0].mxu0 %v523
        %v786 = vpop.f32.mrb[0].mxu0
        %v787 = vadd.f32 %v722, %v786
        %v788 = vpop.f32.mrb[0].mxu0
        %v789 = vpop.f32.mrb[0].mxu0
        %v790 = vadd.f32 %v725, %v789
        %v791 = vpop.f32.mrb[0].mxu0
        %792 = vmatprep.mubr.bf16.mxu0 0
        %793 = vmatmul.mubr.bf16.gmra.mrb[0].mxu0 %v526
        %v794 = vpop.f32.mrb[0].mxu0
        %v795 = vadd.f32 %v730, %v794
        %v796 = vpop.f32.mrb[0].mxu0
        %v797 = vpop.f32.mrb[0].mxu0
        %v798 = vadd.f32 %v733, %v797
        %v799 = vpop.f32.mrb[0].mxu0
        %800 = vdwg.mxu0
        %v849 = vunpack.c.l.b16 %v383
        %v850 = vunpack.c.l.b16 %v384
        %v851 = vunpack.c.l.b16 %v385
        %v852 = vunpack.c.l.b16 %v386
        %v853 = vunpack.c.l.b16 %v387
        %v854 = vunpack.c.l.b16 %v388
        %v855 = vunpack.c.l.b16 %v389
        %v856 = vunpack.c.l.b16 %v390
        %v857 = vunpack.c.l.b16 %v391
        %v858 = vunpack.c.l.b16 %v392
        %v859 = vunpack.c.l.b16 %v393
        %v860 = vunpack.c.l.b16 %v394
        %v861 = vunpack.c.l.b16 %v395
        %v862 = vunpack.c.l.b16 %v396
        %v863 = vunpack.c.l.b16 %v397
        %v864 = vunpack.c.l.b16 %v398
        %v865 = vunpack.c.l.b16 %v399
        %v866 = vunpack.c.l.b16 %v400
        %v867 = vunpack.c.l.b16 %v401
        %v868 = vunpack.c.l.b16 %v402
        %v869 = vunpack.c.l.b16 %v403
        %v870 = vunpack.c.l.b16 %v404
        %v871 = vunpack.c.l.b16 %v405
        %v872 = vunpack.c.l.b16 %v406
        %v873 = vunpack.c.l.b16 %v407
        %v874 = vunpack.c.l.b16 %v408
        %v875 = vunpack.c.l.b16 %v409
        %v876 = vunpack.c.l.b16 %v410
        %v877 = vunpack.c.l.b16 %v411
        %v878 = vunpack.c.l.b16 %v412
        %v879 = vunpack.c.l.b16 %v413
        %v880 = vunpack.c.l.b16 %v414
        %v881 = vunpack.c.l.b16 %v415
        %v882 = vunpack.c.l.b16 %v416
        %v883 = vunpack.c.l.b16 %v417
        %v884 = vunpack.c.l.b16 %v418
        %v885 = vunpack.c.l.b16 %v419
        %v886 = vunpack.c.l.b16 %v420
        %v887 = vunpack.c.l.b16 %v421
        %v888 = vunpack.c.l.b16 %v422
        %v889 = vunpack.c.l.b16 %v423
        %v890 = vunpack.c.l.b16 %v424
        %v891 = vunpack.c.l.b16 %v425
        %v892 = vunpack.c.l.b16 %v426
        %v893 = vunpack.c.l.b16 %v427
        %v894 = vunpack.c.l.b16 %v428
        %v895 = vunpack.c.l.b16 %v429
        %v896 = vunpack.c.l.b16 %v430
        %v897 = vpack.c.b16 %v850, %v849
        %v898 = vpack.c.b16 %v852, %v851
        %v899 = vpack.c.b16 %v854, %v853
        %v900 = vpack.c.b16 %v856, %v855
        %v901 = vpack.c.b16 %v858, %v857
        %v902 = vpack.c.b16 %v860, %v859
        %v903 = vpack.c.b16 %v862, %v861
        %v904 = vpack.c.b16 %v864, %v863
        %v905 = vpack.c.b16 %v866, %v865
        %v906 = vpack.c.b16 %v868, %v867
        %v907 = vpack.c.b16 %v870, %v869
        %v908 = vpack.c.b16 %v872, %v871
        %v909 = vpack.c.b16 %v874, %v873
        %v910 = vpack.c.b16 %v876, %v875
        %v911 = vpack.c.b16 %v878, %v877
        %v912 = vpack.c.b16 %v880, %v879
        %v913 = vpack.c.b16 %v882, %v881
        %v914 = vpack.c.b16 %v884, %v883
        %v915 = vpack.c.b16 %v886, %v885
        %v916 = vpack.c.b16 %v888, %v887
        %v917 = vpack.c.b16 %v890, %v889
        %v918 = vpack.c.b16 %v892, %v891
        %v919 = vpack.c.b16 %v894, %v893
        %v920 = vpack.c.b16 %v896, %v895
        %945 = vmatprep.subr.bf16.mxu0 0
        %946 = vmatpush1.bf16.msra.mxu0 %v897
        %947 = vmatprep.subr.bf16.mxu0 0
        %948 = vmatpush1.bf16.msra.mxu0 %v898
        %949 = vmatprep.subr.bf16.mxu0 0
        %950 = vmatpush1.bf16.msra.mxu0 %v899
        %951 = vmatprep.subr.bf16.mxu0 0
        %952 = vmatpush1.bf16.msra.mxu0 %v900
        %953 = vmatprep.subr.bf16.mxu0 0
        %954 = vmatpush1.bf16.msra.mxu0 %v901
        %955 = vmatprep.subr.bf16.mxu0 0
        %956 = vmatpush1.bf16.msra.mxu0 %v902
        %957 = vmatprep.subr.bf16.mxu0 0
        %958 = vmatpush1.bf16.msra.mxu0 %v903
        %959 = vmatprep.subr.bf16.mxu0 0
        %960 = vmatpush1.bf16.msra.mxu0 %v904
        %961 = vmatprep.subr.bf16.mxu0 0
        %962 = vmatpush1.bf16.msra.mxu0 %v905
        %963 = vmatprep.subr.bf16.mxu0 0
        %964 = vmatpush1.bf16.msra.mxu0 %v906
        %965 = vmatprep.subr.bf16.mxu0 0
        %966 = vmatpush1.bf16.msra.mxu0 %v907
        %967 = vmatprep.subr.bf16.mxu0 0
        %968 = vmatpush1.bf16.msra.mxu0 %v908
        %969 = vmatprep.subr.bf16.mxu0 0
        %970 = vmatpush1.bf16.msra.mxu0 %v909
        %971 = vmatprep.subr.bf16.mxu0 0
        %972 = vmatpush1.bf16.msra.mxu0 %v910
        %973 = vmatprep.subr.bf16.mxu0 0
        %974 = vmatpush1.bf16.msra.mxu0 %v911
        %975 = vmatprep.subr.bf16.mxu0 0
        %976 = vmatpush1.bf16.msra.mxu0 %v912
        %977 = vmatprep.mubr.bf16.mxu0 %v432
        %978 = vmatmul.mubr.bf16.gmra.mrb[0].mxu0 %v431
        %v979 = vpop.f32.mrb[0].mxu0
        %v980 = vadd.f32 %v771, %v979
        %v981 = vpop.f32.mrb[0].mxu0
        %v982 = vpop.f32.mrb[0].mxu0
        %v983 = vadd.f32 %v774, %v982
        %v984 = vpop.f32.mrb[0].mxu0
        %985 = vmatprep.mubr.bf16.mxu0 %v435
        %986 = vmatmul.mubr.bf16.gmra.mrb[0].mxu0 %v434
        %v987 = vpop.f32.mrb[0].mxu0
        %v988 = vadd.f32 %v779, %v987
        %v989 = vpop.f32.mrb[0].mxu0
        %v990 = vpop.f32.mrb[0].mxu0
        %v991 = vadd.f32 %v782, %v990
        %v992 = vpop.f32.mrb[0].mxu0
        %993 = vmatprep.mubr.bf16.mxu0 %v438
        %994 = vmatmul.mubr.bf16.gmra.mrb[0].mxu0 %v437
        %v995 = vpop.f32.mrb[0].mxu0
        %v996 = vadd.f32 %v787, %v995
        %v997 = vpop.f32.mrb[0].mxu0
        %v998 = vpop.f32.mrb[0].mxu0
        %v999 = vadd.f32 %v790, %v998
        %v1000 = vpop.f32.mrb[0].mxu0
        %1001 = vmatprep.mubr.bf16.mxu0 %v441
        %1002 = vmatmul.mubr.bf16.gmra.mrb[0].mxu0 %v440
        %v1003 = vpop.f32.mrb[0].mxu0
        %v1004 = vadd.f32 %v795, %v1003
        %v1005 = vpop.f32.mrb[0].mxu0
        %v1006 = vpop.f32.mrb[0].mxu0
        %v1007 = vadd.f32 %v798, %v1006
        %v1008 = vpop.f32.mrb[0].mxu0
        %1009 = vdwg.mxu0
        %1010 = vmatprep.subr.bf16.mxu0 0
        %1011 = vmatpush1.bf16.msra.mxu0 %v913
        %1012 = vmatprep.subr.bf16.mxu0 0
        %1013 = vmatpush1.bf16.msra.mxu0 %v914
        %1014 = vmatprep.subr.bf16.mxu0 0
        %1015 = vmatpush1.bf16.msra.mxu0 %v915
        %1016 = vmatprep.subr.bf16.mxu0 0
        %1017 = vmatpush1.bf16.msra.mxu0 %v916
        %1018 = vmatprep.subr.bf16.mxu0 0
        %1019 = vmatpush1.bf16.msra.mxu0 %v917
        %1020 = vmatprep.subr.bf16.mxu0 0
        %1021 = vmatpush1.bf16.msra.mxu0 %v918
        %1022 = vmatprep.subr.bf16.mxu0 0
        %1023 = vmatpush1.bf16.msra.mxu0 %v919
        %1024 = vmatprep.subr.bf16.mxu0 0
        %1025 = vmatpush1.bf16.msra.mxu0 %v920
        %1026 = vmatprep.subr.bf16.mxu0 0
        %1027 = vmatpush1.bf16.msra.mxu0 0
        %1028 = vmatprep.subr.bf16.mxu0 0
        %1029 = vmatpush1.bf16.msra.mxu0 0
        %1030 = vmatprep.subr.bf16.mxu0 0
        %1031 = vmatpush1.bf16.msra.mxu0 0
        %1032 = vmatprep.subr.bf16.mxu0 0
        %1033 = vmatpush1.bf16.msra.mxu0 0
        %1034 = vmatprep.subr.bf16.mxu0 0
        %1035 = vmatpush1.bf16.msra.mxu0 0
        %1036 = vmatprep.subr.bf16.mxu0 0
        %1037 = vmatpush1.bf16.msra.mxu0 0
        %1038 = vmatprep.subr.bf16.mxu0 0
        %1039 = vmatpush1.bf16.msra.mxu0 0
        %1040 = vmatprep.subr.bf16.mxu0 0
        %1041 = vmatpush1.bf16.msra.mxu0 0
        %1042 = vmatprep.mubr.bf16.mxu0 0
        %1043 = vmatmul.mubr.bf16.gmra.mrb[0].mxu0 %v433
        %v1044 = vpop.f32.mrb[0].mxu0
        %v1045 = vadd.f32 %v980, %v1044
        %v1046 = vpop.f32.mrb[0].mxu0
        %v1047 = vpop.f32.mrb[0].mxu0
        %v1048 = vadd.f32 %v983, %v1047
        %v1049 = vpop.f32.mrb[0].mxu0
        %1050 = vmatprep.mubr.bf16.mxu0 0
        %1051 = vmatmul.mubr.bf16.gmra.mrb[0].mxu0 %v436
        %v1052 = vpop.f32.mrb[0].mxu0
        %v1053 = vadd.f32 %v988, %v1052
        %v1054 = vpop.f32.mrb[0].mxu0
        %v1055 = vpop.f32.mrb[0].mxu0
        %v1056 = vadd.f32 %v991, %v1055
        %v1057 = vpop.f32.mrb[0].mxu0
        %1058 = vmatprep.mubr.bf16.mxu0 0
        %1059 = vmatmul.mubr.bf16.gmra.mrb[0].mxu0 %v439
        %v1060 = vpop.f32.mrb[0].mxu0
        %v1061 = vadd.f32 %v996, %v1060
        %v1062 = vpop.f32.mrb[0].mxu0
        %v1063 = vpop.f32.mrb[0].mxu0
        %v1064 = vadd.f32 %v999, %v1063
        %v1065 = vpop.f32.mrb[0].mxu0
        %1066 = vmatprep.mubr.bf16.mxu0 0
        %1067 = vmatmul.mubr.bf16.gmra.mrb[0].mxu0 %v442
        %v1068 = vpop.f32.mrb[0].mxu0
        %v1069 = vadd.f32 %v1004, %v1068
        %v1070 = vpop.f32.mrb[0].mxu0
        %v1071 = vpop.f32.mrb[0].mxu0
        %v1072 = vadd.f32 %v1007, %v1071
        %v1073 = vpop.f32.mrb[0].mxu0
        %1074 = vdwg.mxu0
        %s1075 = scalar_lea.vmem [#allocation2], 32
        %v1076 = vld [vmem:[%s1075] sm:$0xff]
        %v1077 = vld [vmem:[%s1075 + $0x10] sm:$0xff]
        %v1078 = vld [vmem:[%s1075 + $0x20] sm:$0xff]
        %v1079 = vld [vmem:[%s1075 + $0x30] sm:$0xff]
        %v1080 = vld [vmem:[%s1075 + $0x40] sm:$0xff]
        %v1081 = vld [vmem:[%s1075 + $0x50] sm:$0xff]
        %v1082 = vld [vmem:[%s1075 + $0x60] sm:$0xff]
        %v1083 = vld [vmem:[%s1075 + $0x70] sm:$0xff]
        %v1084 = vld [vmem:[%s1075 + $0x1] sm:$0xff]
        %v1085 = vld [vmem:[%s1075 + $0x11] sm:$0xff]
        %v1086 = vld [vmem:[%s1075 + $0x21] sm:$0xff]
        %v1087 = vld [vmem:[%s1075 + $0x31] sm:$0xff]
        %v1088 = vld [vmem:[%s1075 + $0x41] sm:$0xff]
        %v1089 = vld [vmem:[%s1075 + $0x51] sm:$0xff]
        %v1090 = vld [vmem:[%s1075 + $0x61] sm:$0xff]
        %v1091 = vld [vmem:[%s1075 + $0x71] sm:$0xff]
        %v1092 = vld [vmem:[%s1075 + $0x2] sm:$0xff]
        %v1093 = vld [vmem:[%s1075 + $0x12] sm:$0xff]
        %v1094 = vld [vmem:[%s1075 + $0x22] sm:$0xff]
        %v1095 = vld [vmem:[%s1075 + $0x32] sm:$0xff]
        %v1096 = vld [vmem:[%s1075 + $0x42] sm:$0xff]
        %v1097 = vld [vmem:[%s1075 + $0x52] sm:$0xff]
        %v1098 = vld [vmem:[%s1075 + $0x62] sm:$0xff]
        %v1099 = vld [vmem:[%s1075 + $0x72] sm:$0xff]
        %v1100 = vld [vmem:[#allocation6 + $0x180] sm:$0xf]
        %v1101 = vld [vmem:[#allocation6 + $0x184] sm:$0xf]
        %v1102 = vld [vmem:[#allocation6 + $0x188] sm:$0xf]
        %v1103 = vld [vmem:[#allocation6 + $0x18c] sm:$0xf]
        %v1104 = vld [vmem:[#allocation6 + $0x190] sm:$0xf]
        %v1105 = vld [vmem:[#allocation6 + $0x194] sm:$0xf]
        %v1106 = vld [vmem:[#allocation6 + $0x198] sm:$0xf]
        %v1107 = vld [vmem:[#allocation6 + $0x19c] sm:$0xf]
        %v1108 = vld [vmem:[#allocation6 + $0x1a0] sm:$0xf]
        %v1109 = vld [vmem:[#allocation6 + $0x1a4] sm:$0xf]
        %v1110 = vld [vmem:[#allocation6 + $0x1a8] sm:$0xf]
        %v1111 = vld [vmem:[#allocation6 + $0x1ac] sm:$0xf]
        %v1112 = vld [vmem:[#allocation6 + $0x1b0] sm:$0xf]
        %v1113 = vld [vmem:[#allocation6 + $0x1b4] sm:$0xf]
        %v1114 = vld [vmem:[#allocation6 + $0x1b8] sm:$0xf]
        %v1115 = vld [vmem:[#allocation6 + $0x1bc] sm:$0xf]
        %v1116 = vld [vmem:[#allocation6 + $0x1c0] sm:$0xf]
        %v1117 = vld [vmem:[#allocation6 + $0x1c4] sm:$0xf]
        %v1118 = vld [vmem:[#allocation6 + $0x1c8] sm:$0xf]
        %v1119 = vld [vmem:[#allocation6 + $0x1cc] sm:$0xf]
        %v1120 = vld [vmem:[#allocation6 + $0x1d0] sm:$0xf]
        %v1121 = vld [vmem:[#allocation6 + $0x1d4] sm:$0xf]
        %v1122 = vld [vmem:[#allocation6 + $0x1d8] sm:$0xf]
        %v1123 = vld [vmem:[#allocation6 + $0x1dc] sm:$0xf]
        %v1124 = vld [vmem:[#allocation6 + $0x1e0] sm:$0xf]
        %v1125 = vld [vmem:[#allocation6 + $0x1e4] sm:$0xf]
        %v1126 = vld [vmem:[#allocation6 + $0x1e8] sm:$0xf]
        %v1127 = vld [vmem:[#allocation6 + $0x1ec] sm:$0xf]
        %v1128 = vld [vmem:[#allocation6 + $0x1f0] sm:$0xf]
        %v1129 = vld [vmem:[#allocation6 + $0x1f4] sm:$0xf]
        %v1130 = vld [vmem:[#allocation6 + $0x1f8] sm:$0xf]
        %v1131 = vld [vmem:[#allocation6 + $0x1fc] sm:$0xf]
        %v1132 = vld [vmem:[#allocation6 + $0x200] sm:$0xf]
        %v1133 = vld [vmem:[#allocation6 + $0x204] sm:$0xf]
        %v1134 = vld [vmem:[#allocation6 + $0x208] sm:$0xf]
        %v1135 = vld [vmem:[#allocation6 + $0x20c] sm:$0xf]
        %v1136 = vld [vmem:[#allocation6 + $0x210] sm:$0xf]
        %v1137 = vld [vmem:[#allocation6 + $0x214] sm:$0xf]
        %v1138 = vld [vmem:[#allocation6 + $0x218] sm:$0xf]
        %v1139 = vld [vmem:[#allocation6 + $0x21c] sm:$0xf]
        %v1140 = vld [vmem:[#allocation6 + $0x220] sm:$0xf]
        %v1141 = vld [vmem:[#allocation6 + $0x224] sm:$0xf]
        %v1142 = vld [vmem:[#allocation6 + $0x228] sm:$0xf]
        %v1143 = vld [vmem:[#allocation6 + $0x22c] sm:$0xf]
        %v1144 = vld [vmem:[#allocation6 + $0x230] sm:$0xf]
        %v1145 = vld [vmem:[#allocation6 + $0x234] sm:$0xf]
        %v1146 = vld [vmem:[#allocation6 + $0x238] sm:$0xf]
        %v1147 = vld [vmem:[#allocation6 + $0x23c] sm:$0xf]
        %v1148 = vpack.c.bf16 %v1077, %v1076
        %v1149 = vpack.c.bf16 %v1085, %v1084
        %v1150 = vpack.c.bf16 %v1093, %v1092
        %v1151 = vpack.c.bf16 %v1079, %v1078
        %v1152 = vpack.c.bf16 %v1087, %v1086
        %v1153 = vpack.c.bf16 %v1095, %v1094
        %v1154 = vpack.c.bf16 %v1081, %v1080
        %v1155 = vpack.c.bf16 %v1089, %v1088
        %v1156 = vpack.c.bf16 %v1097, %v1096
        %v1157 = vpack.c.bf16 %v1083, %v1082
        %v1158 = vpack.c.bf16 %v1091, %v1090
        %v1159 = vpack.c.bf16 %v1099, %v1098
        %v1208 = vunpack.c.l.b16 %v1100
        %v1209 = vunpack.c.l.b16 %v1101
        %v1210 = vunpack.c.l.b16 %v1102
        %v1211 = vunpack.c.l.b16 %v1103
        %v1212 = vunpack.c.l.b16 %v1104
        %v1213 = vunpack.c.l.b16 %v1105
        %v1214 = vunpack.c.l.b16 %v1106
        %v1215 = vunpack.c.l.b16 %v1107
        %v1216 = vunpack.c.l.b16 %v1108
        %v1217 = vunpack.c.l.b16 %v1109
        %v1218 = vunpack.c.l.b16 %v1110
        %v1219 = vunpack.c.l.b16 %v1111
        %v1220 = vunpack.c.l.b16 %v1112
        %v1221 = vunpack.c.l.b16 %v1113
        %v1222 = vunpack.c.l.b16 %v1114
        %v1223 = vunpack.c.l.b16 %v1115
        %v1224 = vunpack.c.l.b16 %v1116
        %v1225 = vunpack.c.l.b16 %v1117
        %v1226 = vunpack.c.l.b16 %v1118
        %v1227 = vunpack.c.l.b16 %v1119
        %v1228 = vunpack.c.l.b16 %v1120
        %v1229 = vunpack.c.l.b16 %v1121
        %v1230 = vunpack.c.l.b16 %v1122
        %v1231 = vunpack.c.l.b16 %v1123
        %v1232 = vunpack.c.l.b16 %v1124
        %v1233 = vunpack.c.l.b16 %v1125
        %v1234 = vunpack.c.l.b16 %v1126
        %v1235 = vunpack.c.l.b16 %v1127
        %v1236 = vunpack.c.l.b16 %v1128
        %v1237 = vunpack.c.l.b16 %v1129
        %v1238 = vunpack.c.l.b16 %v1130
        %v1239 = vunpack.c.l.b16 %v1131
        %v1240 = vunpack.c.l.b16 %v1132
        %v1241 = vunpack.c.l.b16 %v1133
        %v1242 = vunpack.c.l.b16 %v1134
        %v1243 = vunpack.c.l.b16 %v1135
        %v1244 = vunpack.c.l.b16 %v1136
        %v1245 = vunpack.c.l.b16 %v1137
        %v1246 = vunpack.c.l.b16 %v1138
        %v1247 = vunpack.c.l.b16 %v1139
        %v1248 = vunpack.c.l.b16 %v1140
        %v1249 = vunpack.c.l.b16 %v1141
        %v1250 = vunpack.c.l.b16 %v1142
        %v1251 = vunpack.c.l.b16 %v1143
        %v1252 = vunpack.c.l.b16 %v1144
        %v1253 = vunpack.c.l.b16 %v1145
        %v1254 = vunpack.c.l.b16 %v1146
        %v1255 = vunpack.c.l.b16 %v1147
        %v1256 = vpack.c.b16 %v1209, %v1208
        %v1257 = vpack.c.b16 %v1211, %v1210
        %v1258 = vpack.c.b16 %v1213, %v1212
        %v1259 = vpack.c.b16 %v1215, %v1214
        %v1260 = vpack.c.b16 %v1217, %v1216
        %v1261 = vpack.c.b16 %v1219, %v1218
        %v1262 = vpack.c.b16 %v1221, %v1220
        %v1263 = vpack.c.b16 %v1223, %v1222
        %v1264 = vpack.c.b16 %v1225, %v1224
        %v1265 = vpack.c.b16 %v1227, %v1226
        %v1266 = vpack.c.b16 %v1229, %v1228
        %v1267 = vpack.c.b16 %v1231, %v1230
        %v1268 = vpack.c.b16 %v1233, %v1232
        %v1269 = vpack.c.b16 %v1235, %v1234
        %v1270 = vpack.c.b16 %v1237, %v1236
        %v1271 = vpack.c.b16 %v1239, %v1238
        %v1272 = vpack.c.b16 %v1241, %v1240
        %v1273 = vpack.c.b16 %v1243, %v1242
        %v1274 = vpack.c.b16 %v1245, %v1244
        %v1275 = vpack.c.b16 %v1247, %v1246
        %v1276 = vpack.c.b16 %v1249, %v1248
        %v1277 = vpack.c.b16 %v1251, %v1250
        %v1278 = vpack.c.b16 %v1253, %v1252
        %v1279 = vpack.c.b16 %v1255, %v1254
        %1304 = vmatprep.subr.bf16.mxu0 0
        %1305 = vmatpush1.bf16.msra.mxu0 %v1256
        %1306 = vmatprep.subr.bf16.mxu0 0
        %1307 = vmatpush1.bf16.msra.mxu0 %v1257
        %1308 = vmatprep.subr.bf16.mxu0 0
        %1309 = vmatpush1.bf16.msra.mxu0 %v1258
        %1310 = vmatprep.subr.bf16.mxu0 0
        %1311 = vmatpush1.bf16.msra.mxu0 %v1259
        %1312 = vmatprep.subr.bf16.mxu0 0
        %1313 = vmatpush1.bf16.msra.mxu0 %v1260
        %1314 = vmatprep.subr.bf16.mxu0 0
        %1315 = vmatpush1.bf16.msra.mxu0 %v1261
        %1316 = vmatprep.subr.bf16.mxu0 0
        %1317 = vmatpush1.bf16.msra.mxu0 %v1262
        %1318 = vmatprep.subr.bf16.mxu0 0
        %1319 = vmatpush1.bf16.msra.mxu0 %v1263
        %1320 = vmatprep.subr.bf16.mxu0 0
        %1321 = vmatpush1.bf16.msra.mxu0 %v1264
        %1322 = vmatprep.subr.bf16.mxu0 0
        %1323 = vmatpush1.bf16.msra.mxu0 %v1265
        %1324 = vmatprep.subr.bf16.mxu0 0
        %1325 = vmatpush1.bf16.msra.mxu0 %v1266
        %1326 = vmatprep.subr.bf16.mxu0 0
        %1327 = vmatpush1.bf16.msra.mxu0 %v1267
        %1328 = vmatprep.subr.bf16.mxu0 0
        %1329 = vmatpush1.bf16.msra.mxu0 %v1268
        %1330 = vmatprep.subr.bf16.mxu0 0
        %1331 = vmatpush1.bf16.msra.mxu0 %v1269
        %1332 = vmatprep.subr.bf16.mxu0 0
        %1333 = vmatpush1.bf16.msra.mxu0 %v1270
        %1334 = vmatprep.subr.bf16.mxu0 0
        %1335 = vmatpush1.bf16.msra.mxu0 %v1271
        %1336 = vmatprep.mubr.bf16.mxu0 %v1149
        %1337 = vmatmul.mubr.bf16.gmra.mrb[0].mxu0 %v1148
        %v1338 = vpop.f32.mrb[0].mxu0
        %v1339 = vadd.f32 0.0, %v1338
        %v1340 = vpop.f32.mrb[0].mxu0
        %v1341 = vpop.f32.mrb[0].mxu0
        %v1342 = vadd.f32 0.0, %v1341
        %v1343 = vpop.f32.mrb[0].mxu0
        %1344 = vmatprep.mubr.bf16.mxu0 %v1152
        %1345 = vmatmul.mubr.bf16.gmra.mrb[0].mxu0 %v1151
        %v1346 = vpop.f32.mrb[0].mxu0
        %v1347 = vadd.f32 0.0, %v1346
        %v1348 = vpop.f32.mrb[0].mxu0
        %v1349 = vpop.f32.mrb[0].mxu0
        %v1350 = vadd.f32 0.0, %v1349
        %v1351 = vpop.f32.mrb[0].mxu0
        %1352 = vmatprep.mubr.bf16.mxu0 %v1155
        %1353 = vmatmul.mubr.bf16.gmra.mrb[0].mxu0 %v1154
        %v1354 = vpop.f32.mrb[0].mxu0
        %v1355 = vadd.f32 0.0, %v1354
        %v1356 = vpop.f32.mrb[0].mxu0
        %v1357 = vpop.f32.mrb[0].mxu0
        %v1358 = vadd.f32 0.0, %v1357
        %v1359 = vpop.f32.mrb[0].mxu0
        %1360 = vmatprep.mubr.bf16.mxu0 %v1158
        %1361 = vmatmul.mubr.bf16.gmra.mrb[0].mxu0 %v1157
        %v1362 = vpop.f32.mrb[0].mxu0
        %v1363 = vadd.f32 0.0, %v1362
        %v1364 = vpop.f32.mrb[0].mxu0
        %v1365 = vpop.f32.mrb[0].mxu0
        %v1366 = vadd.f32 0.0, %v1365
        %v1367 = vpop.f32.mrb[0].mxu0
        %1368 = vdwg.mxu0
        %1369 = vmatprep.subr.bf16.mxu0 0
        %1370 = vmatpush1.bf16.msra.mxu0 %v1272
        %1371 = vmatprep.subr.bf16.mxu0 0
        %1372 = vmatpush1.bf16.msra.mxu0 %v1273
        %1373 = vmatprep.subr.bf16.mxu0 0
        %1374 = vmatpush1.bf16.msra.mxu0 %v1274
        %1375 = vmatprep.subr.bf16.mxu0 0
        %1376 = vmatpush1.bf16.msra.mxu0 %v1275
        %1377 = vmatprep.subr.bf16.mxu0 0
        %1378 = vmatpush1.bf16.msra.mxu0 %v1276
        %1379 = vmatprep.subr.bf16.mxu0 0
        %1380 = vmatpush1.bf16.msra.mxu0 %v1277
        %1381 = vmatprep.subr.bf16.mxu0 0
        %1382 = vmatpush1.bf16.msra.mxu0 %v1278
        %1383 = vmatprep.subr.bf16.mxu0 0
        %1384 = vmatpush1.bf16.msra.mxu0 %v1279
        %1385 = vmatprep.subr.bf16.mxu0 0
        %1386 = vmatpush1.bf16.msra.mxu0 0
        %1387 = vmatprep.subr.bf16.mxu0 0
        %1388 = vmatpush1.bf16.msra.mxu0 0
        %1389 = vmatprep.subr.bf16.mxu0 0
        %1390 = vmatpush1.bf16.msra.mxu0 0
        %1391 = vmatprep.subr.bf16.mxu0 0
        %1392 = vmatpush1.bf16.msra.mxu0 0
        %1393 = vmatprep.subr.bf16.mxu0 0
        %1394 = vmatpush1.bf16.msra.mxu0 0
        %1395 = vmatprep.subr.bf16.mxu0 0
        %1396 = vmatpush1.bf16.msra.mxu0 0
        %1397 = vmatprep.subr.bf16.mxu0 0
        %1398 = vmatpush1.bf16.msra.mxu0 0
        %1399 = vmatprep.subr.bf16.mxu0 0
        %1400 = vmatpush1.bf16.msra.mxu0 0
        %1401 = vmatprep.mubr.bf16.mxu0 0
        %1402 = vmatmul.mubr.bf16.gmra.mrb[0].mxu0 %v1150
        %v1403 = vpop.f32.mrb[0].mxu0
        %v1404 = vadd.f32 %v1339, %v1403
        %v1405 = vpop.f32.mrb[0].mxu0
        %v1406 = vpop.f32.mrb[0].mxu0
        %v1407 = vadd.f32 %v1342, %v1406
        %v1408 = vpop.f32.mrb[0].mxu0
        %1409 = vmatprep.mubr.bf16.mxu0 0
        %1410 = vmatmul.mubr.bf16.gmra.mrb[0].mxu0 %v1153
        %v1411 = vpop.f32.mrb[0].mxu0
        %v1412 = vadd.f32 %v1347, %v1411
        %v1413 = vpop.f32.mrb[0].mxu0
        %v1414 = vpop.f32.mrb[0].mxu0
        %v1415 = vadd.f32 %v1350, %v1414
        %v1416 = vpop.f32.mrb[0].mxu0
        %1417 = vmatprep.mubr.bf16.mxu0 0
        %1418 = vmatmul.mubr.bf16.gmra.mrb[0].mxu0 %v1156
        %v1419 = vpop.f32.mrb[0].mxu0
        %v1420 = vadd.f32 %v1355, %v1419
        %v1421 = vpop.f32.mrb[0].mxu0
        %v1422 = vpop.f32.mrb[0].mxu0
        %v1423 = vadd.f32 %v1358, %v1422
        %v1424 = vpop.f32.mrb[0].mxu0
        %1425 = vmatprep.mubr.bf16.mxu0 0
        %1426 = vmatmul.mubr.bf16.gmra.mrb[0].mxu0 %v1159
        %v1427 = vpop.f32.mrb[0].mxu0
        %v1428 = vadd.f32 %v1363, %v1427
        %v1429 = vpop.f32.mrb[0].mxu0
        %v1430 = vpop.f32.mrb[0].mxu0
        %v1431 = vadd.f32 %v1366, %v1430
        %v1432 = vpop.f32.mrb[0].mxu0
        %1433 = vdwg.mxu0
        %v1434 = vadd.f32 %v1045, %v1404
        %v1435 = vadd.f32 %v1048, %v1407
        %v1436 = vadd.f32 %v1053, %v1412
        %v1437 = vadd.f32 %v1056, %v1415
        %v1438 = vadd.f32 %v1061, %v1420
        %v1439 = vadd.f32 %v1064, %v1423
        %v1440 = vadd.f32 %v1069, %v1428
        %v1441 = vadd.f32 %v1072, %v1431
        %v1442 = vld [vmem:[%s2] sm:$0x1]
        %v1444 = vlaneseq
        %v1445 = vshrl.u32 %v1444, 7
        %v1446 = vsub.s32 0, %v1445
        %v1447 = vrot.slane %v1442, %v1446
        %v1449 = vadd.f32 %v1434, %v1447
        %v1450 = vadd.f32 %v1435, %v1447
        %v1451 = vadd.f32 %v1436, %v1447
        %v1452 = vadd.f32 %v1437, %v1447
        %v1453 = vadd.f32 %v1438, %v1447
        %v1454 = vadd.f32 %v1439, %v1447
        %v1455 = vadd.f32 %v1440, %v1447
        %v1456 = vadd.f32 %v1441, %v1447
        %v1457 = vmax.f32 %v1449, 0.0
        %v1458 = vmax.f32 %v1450, 0.0
        %v1459 = vmax.f32 %v1451, 0.0
        %v1460 = vmax.f32 %v1452, 0.0
        %v1461 = vmax.f32 %v1453, 0.0
        %v1462 = vmax.f32 %v1454, 0.0
        %v1463 = vmax.f32 %v1455, 0.0
        %v1464 = vmax.f32 %v1456, 0.0
        %v1473 = vrot.slane %v1457, 7
        %v1474 = vrot.slane %v1458, 7
        %v1475 = vrot.slane %v1459, 7
        %v1476 = vrot.slane %v1460, 7
        %v1477 = vrot.slane %v1461, 7
        %v1478 = vrot.slane %v1462, 7
        %v1479 = vrot.slane %v1463, 7
        %v1480 = vrot.slane %v1464, 7
        %v1489 = vsel %vm325, 0.0, %v1473
        %v1490 = vsel %vm325, 0.0, %v1474
        %v1491 = vsel %vm325, 0.0, %v1475
        %v1492 = vsel %vm325, 0.0, %v1476
        %v1493 = vsel %vm325, 0.0, %v1477
        %v1494 = vsel %vm325, 0.0, %v1478
        %v1495 = vsel %vm325, 0.0, %v1479
        %v1496 = vsel %vm325, 0.0, %v1480
        %v1497 = vsel %vm325, %v1473, 0.0
        %v1498 = vsel %vm325, %v1474, 0.0
        %v1499 = vsel %vm325, %v1475, 0.0
        %v1500 = vsel %vm325, %v1476, 0.0
        %v1501 = vsel %vm325, %v1477, 0.0
        %v1502 = vsel %vm325, %v1478, 0.0
        %v1503 = vsel %vm325, %v1479, 0.0
        %v1504 = vsel %vm325, %v1480, 0.0
        %1505 = vst [vmem:[%s342] sm:$0xff] %v1489
        %1506 = vst [vmem:[%s342 + $0x8] sm:$0x3] %v1497
        %1507 = vst [vmem:[%s342 + $0x10] sm:$0xff] %v1490
        %1508 = vst [vmem:[%s342 + $0x18] sm:$0x3] %v1498
        %1509 = vst [vmem:[%s342 + $0x20] sm:$0xff] %v1491
        %1510 = vst [vmem:[%s342 + $0x28] sm:$0x3] %v1499
        %1511 = vst [vmem:[%s342 + $0x30] sm:$0xff] %v1492
        %1512 = vst [vmem:[%s342 + $0x38] sm:$0x3] %v1500
        %1513 = vst [vmem:[%s342 + $0x40] sm:$0xff] %v1493
        %1514 = vst [vmem:[%s342 + $0x48] sm:$0x3] %v1501
        %1515 = vst [vmem:[%s342 + $0x50] sm:$0xff] %v1494
        %1516 = vst [vmem:[%s342 + $0x58] sm:$0x3] %v1502
        %1517 = vst [vmem:[%s342 + $0x60] sm:$0xff] %v1495
        %1518 = vst [vmem:[%s342 + $0x68] sm:$0x3] %v1503
        %1519 = vst [vmem:[%s342 + $0x70] sm:$0xff] %v1496
        %1520 = vst [vmem:[%s342 + $0x78] sm:$0x3] %v1504
        %v1521 = vld [vmem:[#allocation2] sm:$0xff]
        %v1522 = vld [vmem:[#allocation2 + $0x10] sm:$0xff]
        %v1523 = vld [vmem:[#allocation2 + $0x20] sm:$0xff]
        %v1524 = vld [vmem:[#allocation2 + $0x30] sm:$0xff]
        %v1525 = vld [vmem:[#allocation2 + $0x40] sm:$0xff]
        %v1526 = vld [vmem:[#allocation2 + $0x50] sm:$0xff]
        %v1527 = vld [vmem:[#allocation2 + $0x60] sm:$0xff]
        %v1528 = vld [vmem:[#allocation2 + $0x70] sm:$0xff]
        %v1529 = vld [vmem:[#allocation2 + $0x1] sm:$0xff]
        %v1530 = vld [vmem:[#allocation2 + $0x11] sm:$0xff]
        %v1531 = vld [vmem:[#allocation2 + $0x21] sm:$0xff]
        %v1532 = vld [vmem:[#allocation2 + $0x31] sm:$0xff]
        %v1533 = vld [vmem:[#allocation2 + $0x41] sm:$0xff]
        %v1534 = vld [vmem:[#allocation2 + $0x51] sm:$0xff]
        %v1535 = vld [vmem:[#allocation2 + $0x61] sm:$0xff]
        %v1536 = vld [vmem:[#allocation2 + $0x71] sm:$0xff]
        %v1537 = vld [vmem:[#allocation2 + $0x2] sm:$0xff]
        %v1538 = vld [vmem:[#allocation2 + $0x12] sm:$0xff]
        %v1539 = vld [vmem:[#allocation2 + $0x22] sm:$0xff]
        %v1540 = vld [vmem:[#allocation2 + $0x32] sm:$0xff]
        %v1541 = vld [vmem:[#allocation2 + $0x42] sm:$0xff]
        %v1542 = vld [vmem:[#allocation2 + $0x52] sm:$0xff]
        %v1543 = vld [vmem:[#allocation2 + $0x62] sm:$0xff]
        %v1544 = vld [vmem:[#allocation2 + $0x72] sm:$0xff]
        %v1545 = vld [vmem:[#allocation8] sm:$0xf]
        %v1546 = vld [vmem:[#allocation8 + $0x4] sm:$0xf]
        %v1547 = vld [vmem:[#allocation8 + $0x8] sm:$0xf]
        %v1548 = vld [vmem:[#allocation8 + $0xc] sm:$0xf]
        %v1549 = vld [vmem:[#allocation8 + $0x10] sm:$0xf]
        %v1550 = vld [vmem:[#allocation8 + $0x14] sm:$0xf]
        %v1551 = vld [vmem:[#allocation8 + $0x18] sm:$0xf]
        %v1552 = vld [vmem:[#allocation8 + $0x1c] sm:$0xf]
        %v1553 = vld [vmem:[#allocation8 + $0x20] sm:$0xf]
        %v1554 = vld [vmem:[#allocation8 + $0x24] sm:$0xf]
        %v1555 = vld [vmem:[#allocation8 + $0x28] sm:$0xf]
        %v1556 = vld [vmem:[#allocation8 + $0x2c] sm:$0xf]
        %v1557 = vld [vmem:[#allocation8 + $0x30] sm:$0xf]
        %v1558 = vld [vmem:[#allocation8 + $0x34] sm:$0xf]
        %v1559 = vld [vmem:[#allocation8 + $0x38] sm:$0xf]
        %v1560 = vld [vmem:[#allocation8 + $0x3c] sm:$0xf]
        %v1561 = vld [vmem:[#allocation8 + $0x40] sm:$0xf]
        %v1562 = vld [vmem:[#allocation8 + $0x44] sm:$0xf]
        %v1563 = vld [vmem:[#allocation8 + $0x48] sm:$0xf]
        %v1564 = vld [vmem:[#allocation8 + $0x4c] sm:$0xf]
        %v1565 = vld [vmem:[#allocation8 + $0x50] sm:$0xf]
        %v1566 = vld [vmem:[#allocation8 + $0x54] sm:$0xf]
        %v1567 = vld [vmem:[#allocation8 + $0x58] sm:$0xf]
        %v1568 = vld [vmem:[#allocation8 + $0x5c] sm:$0xf]
        %v1569 = vld [vmem:[#allocation8 + $0x60] sm:$0xf]
        %v1570 = vld [vmem:[#allocation8 + $0x64] sm:$0xf]
        %v1571 = vld [vmem:[#allocation8 + $0x68] sm:$0xf]
        %v1572 = vld [vmem:[#allocation8 + $0x6c] sm:$0xf]
        %v1573 = vld [vmem:[#allocation8 + $0x70] sm:$0xf]
        %v1574 = vld [vmem:[#allocation8 + $0x74] sm:$0xf]
        %v1575 = vld [vmem:[#allocation8 + $0x78] sm:$0xf]
        %v1576 = vld [vmem:[#allocation8 + $0x7c] sm:$0xf]
        %v1577 = vld [vmem:[#allocation8 + $0x80] sm:$0xf]
        %v1578 = vld [vmem:[#allocation8 + $0x84] sm:$0xf]
        %v1579 = vld [vmem:[#allocation8 + $0x88] sm:$0xf]
        %v1580 = vld [vmem:[#allocation8 + $0x8c] sm:$0xf]
        %v1581 = vld [vmem:[#allocation8 + $0x90] sm:$0xf]
        %v1582 = vld [vmem:[#allocation8 + $0x94] sm:$0xf]
        %v1583 = vld [vmem:[#allocation8 + $0x98] sm:$0xf]
        %v1584 = vld [vmem:[#allocation8 + $0x9c] sm:$0xf]
        %v1585 = vld [vmem:[#allocation8 + $0xa0] sm:$0xf]
        %v1586 = vld [vmem:[#allocation8 + $0xa4] sm:$0xf]
        %v1587 = vld [vmem:[#allocation8 + $0xa8] sm:$0xf]
        %v1588 = vld [vmem:[#allocation8 + $0xac] sm:$0xf]
        %v1589 = vld [vmem:[#allocation8 + $0xb0] sm:$0xf]
        %v1590 = vld [vmem:[#allocation8 + $0xb4] sm:$0xf]
        %v1591 = vld [vmem:[#allocation8 + $0xb8] sm:$0xf]
        %v1592 = vld [vmem:[#allocation8 + $0xbc] sm:$0xf]
        %v1593 = vpack.c.bf16 %v1522, %v1521
        %v1594 = vpack.c.bf16 %v1530, %v1529
        %v1595 = vpack.c.bf16 %v1538, %v1537
        %v1596 = vpack.c.bf16 %v1524, %v1523
        %v1597 = vpack.c.bf16 %v1532, %v1531
        %v1598 = vpack.c.bf16 %v1540, %v1539
        %v1599 = vpack.c.bf16 %v1526, %v1525
        %v1600 = vpack.c.bf16 %v1534, %v1533
        %v1601 = vpack.c.bf16 %v1542, %v1541
        %v1602 = vpack.c.bf16 %v1528, %v1527
        %v1603 = vpack.c.bf16 %v1536, %v1535
        %v1604 = vpack.c.bf16 %v1544, %v1543
        %v1605 = vld [vmem:[%s342] sm:$0xff]
        %v1606 = vld [vmem:[%s342 + $0x10] sm:$0xff]
        %v1607 = vld [vmem:[%s342 + $0x20] sm:$0xff]
        %v1608 = vld [vmem:[%s342 + $0x30] sm:$0xff]
        %v1609 = vld [vmem:[%s342 + $0x40] sm:$0xff]
        %v1610 = vld [vmem:[%s342 + $0x50] sm:$0xff]
        %v1611 = vld [vmem:[%s342 + $0x60] sm:$0xff]
        %v1612 = vld [vmem:[%s342 + $0x70] sm:$0xff]
        %v1613 = vld [vmem:[%s342 + $0x1] sm:$0xff]
        %v1614 = vld [vmem:[%s342 + $0x11] sm:$0xff]
        %v1615 = vld [vmem:[%s342 + $0x21] sm:$0xff]
        %v1616 = vld [vmem:[%s342 + $0x31] sm:$0xff]
        %v1617 = vld [vmem:[%s342 + $0x41] sm:$0xff]
        %v1618 = vld [vmem:[%s342 + $0x51] sm:$0xff]
        %v1619 = vld [vmem:[%s342 + $0x61] sm:$0xff]
        %v1620 = vld [vmem:[%s342 + $0x71] sm:$0xff]
        %v1621 = vld [vmem:[%s342 + $0x2] sm:$0xff]
        %v1622 = vld [vmem:[%s342 + $0x12] sm:$0xff]
        %v1623 = vld [vmem:[%s342 + $0x22] sm:$0xff]
        %v1624 = vld [vmem:[%s342 + $0x32] sm:$0xff]
        %v1625 = vld [vmem:[%s342 + $0x42] sm:$0xff]
        %v1626 = vld [vmem:[%s342 + $0x52] sm:$0xff]
        %v1627 = vld [vmem:[%s342 + $0x62] sm:$0xff]
        %v1628 = vld [vmem:[%s342 + $0x72] sm:$0xff]
        %v1629 = vld [vmem:[#allocation8 + $0xc0] sm:$0xf]
        %v1630 = vld [vmem:[#allocation8 + $0xc4] sm:$0xf]
        %v1631 = vld [vmem:[#allocation8 + $0xc8] sm:$0xf]
        %v1632 = vld [vmem:[#allocation8 + $0xcc] sm:$0xf]
        %v1633 = vld [vmem:[#allocation8 + $0xd0] sm:$0xf]
        %v1634 = vld [vmem:[#allocation8 + $0xd4] sm:$0xf]
        %v1635 = vld [vmem:[#allocation8 + $0xd8] sm:$0xf]
        %v1636 = vld [vmem:[#allocation8 + $0xdc] sm:$0xf]
        %v1637 = vld [vmem:[#allocation8 + $0xe0] sm:$0xf]
        %v1638 = vld [vmem:[#allocation8 + $0xe4] sm:$0xf]
        %v1639 = vld [vmem:[#allocation8 + $0xe8] sm:$0xf]
        %v1640 = vld [vmem:[#allocation8 + $0xec] sm:$0xf]
        %v1641 = vld [vmem:[#allocation8 + $0xf0] sm:$0xf]
        %v1642 = vld [vmem:[#allocation8 + $0xf4] sm:$0xf]
        %v1643 = vld [vmem:[#allocation8 + $0xf8] sm:$0xf]
        %v1644 = vld [vmem:[#allocation8 + $0xfc] sm:$0xf]
        %v1645 = vld [vmem:[#allocation8 + $0x100] sm:$0xf]
        %v1646 = vld [vmem:[#allocation8 + $0x104] sm:$0xf]
        %v1647 = vld [vmem:[#allocation8 + $0x108] sm:$0xf]
        %v1648 = vld [vmem:[#allocation8 + $0x10c] sm:$0xf]
        %v1649 = vld [vmem:[#allocation8 + $0x110] sm:$0xf]
        %v1650 = vld [vmem:[#allocation8 + $0x114] sm:$0xf]
        %v1651 = vld [vmem:[#allocation8 + $0x118] sm:$0xf]
        %v1652 = vld [vmem:[#allocation8 + $0x11c] sm:$0xf]
        %v1653 = vld [vmem:[#allocation8 + $0x120] sm:$0xf]
        %v1654 = vld [vmem:[#allocation8 + $0x124] sm:$0xf]
        %v1655 = vld [vmem:[#allocation8 + $0x128] sm:$0xf]
        %v1656 = vld [vmem:[#allocation8 + $0x12c] sm:$0xf]
        %v1657 = vld [vmem:[#allocation8 + $0x130] sm:$0xf]
        %v1658 = vld [vmem:[#allocation8 + $0x134] sm:$0xf]
        %v1659 = vld [vmem:[#allocation8 + $0x138] sm:$0xf]
        %v1660 = vld [vmem:[#allocation8 + $0x13c] sm:$0xf]
        %v1661 = vld [vmem:[#allocation8 + $0x140] sm:$0xf]
        %v1662 = vld [vmem:[#allocation8 + $0x144] sm:$0xf]
        %v1663 = vld [vmem:[#allocation8 + $0x148] sm:$0xf]
        %v1664 = vld [vmem:[#allocation8 + $0x14c] sm:$0xf]
        %v1665 = vld [vmem:[#allocation8 + $0x150] sm:$0xf]
        %v1666 = vld [vmem:[#allocation8 + $0x154] sm:$0xf]
        %v1667 = vld [vmem:[#allocation8 + $0x158] sm:$0xf]
        %v1668 = vld [vmem:[#allocation8 + $0x15c] sm:$0xf]
        %v1669 = vld [vmem:[#allocation8 + $0x160] sm:$0xf]
        %v1670 = vld [vmem:[#allocation8 + $0x164] sm:$0xf]
        %v1671 = vld [vmem:[#allocation8 + $0x168] sm:$0xf]
        %v1672 = vld [vmem:[#allocation8 + $0x16c] sm:$0xf]
        %v1673 = vld [vmem:[#allocation8 + $0x170] sm:$0xf]
        %v1674 = vld [vmem:[#allocation8 + $0x174] sm:$0xf]
        %v1675 = vld [vmem:[#allocation8 + $0x178] sm:$0xf]
        %v1676 = vld [vmem:[#allocation8 + $0x17c] sm:$0xf]
        %v1677 = vpack.c.bf16 %v1606, %v1605
        %v1678 = vpack.c.bf16 %v1614, %v1613
        %v1679 = vpack.c.bf16 %v1622, %v1621
        %v1680 = vpack.c.bf16 %v1608, %v1607
        %v1681 = vpack.c.bf16 %v1616, %v1615
        %v1682 = vpack.c.bf16 %v1624, %v1623
        %v1683 = vpack.c.bf16 %v1610, %v1609
        %v1684 = vpack.c.bf16 %v1618, %v1617
        %v1685 = vpack.c.bf16 %v1626, %v1625
        %v1686 = vpack.c.bf16 %v1612, %v1611
        %v1687 = vpack.c.bf16 %v1620, %v1619
        %v1688 = vpack.c.bf16 %v1628, %v1627
        %v1737 = vunpack.c.l.b16 %v1629
        %v1738 = vunpack.c.l.b16 %v1630
        %v1739 = vunpack.c.l.b16 %v1631
        %v1740 = vunpack.c.l.b16 %v1632
        %v1741 = vunpack.c.l.b16 %v1633
        %v1742 = vunpack.c.l.b16 %v1634
        %v1743 = vunpack.c.l.b16 %v1635
        %v1744 = vunpack.c.l.b16 %v1636
        %v1745 = vunpack.c.l.b16 %v1637
        %v1746 = vunpack.c.l.b16 %v1638
        %v1747 = vunpack.c.l.b16 %v1639
        %v1748 = vunpack.c.l.b16 %v1640
        %v1749 = vunpack.c.l.b16 %v1641
        %v1750 = vunpack.c.l.b16 %v1642
        %v1751 = vunpack.c.l.b16 %v1643
        %v1752 = vunpack.c.l.b16 %v1644
        %v1753 = vunpack.c.l.b16 %v1645
        %v1754 = vunpack.c.l.b16 %v1646
        %v1755 = vunpack.c.l.b16 %v1647
        %v1756 = vunpack.c.l.b16 %v1648
        %v1757 = vunpack.c.l.b16 %v1649
        %v1758 = vunpack.c.l.b16 %v1650
        %v1759 = vunpack.c.l.b16 %v1651
        %v1760 = vunpack.c.l.b16 %v1652
        %v1761 = vunpack.c.l.b16 %v1653
        %v1762 = vunpack.c.l.b16 %v1654
        %v1763 = vunpack.c.l.b16 %v1655
        %v1764 = vunpack.c.l.b16 %v1656
        %v1765 = vunpack.c.l.b16 %v1657
        %v1766 = vunpack.c.l.b16 %v1658
        %v1767 = vunpack.c.l.b16 %v1659
        %v1768 = vunpack.c.l.b16 %v1660
        %v1769 = vunpack.c.l.b16 %v1661
        %v1770 = vunpack.c.l.b16 %v1662
        %v1771 = vunpack.c.l.b16 %v1663
        %v1772 = vunpack.c.l.b16 %v1664
        %v1773 = vunpack.c.l.b16 %v1665
        %v1774 = vunpack.c.l.b16 %v1666
        %v1775 = vunpack.c.l.b16 %v1667
        %v1776 = vunpack.c.l.b16 %v1668
        %v1777 = vunpack.c.l.b16 %v1669
        %v1778 = vunpack.c.l.b16 %v1670
        %v1779 = vunpack.c.l.b16 %v1671
        %v1780 = vunpack.c.l.b16 %v1672
        %v1781 = vunpack.c.l.b16 %v1673
        %v1782 = vunpack.c.l.b16 %v1674
        %v1783 = vunpack.c.l.b16 %v1675
        %v1784 = vunpack.c.l.b16 %v1676
        %v1785 = vpack.c.b16 %v1738, %v1737
        %v1786 = vpack.c.b16 %v1740, %v1739
        %v1787 = vpack.c.b16 %v1742, %v1741
        %v1788 = vpack.c.b16 %v1744, %v1743
        %v1789 = vpack.c.b16 %v1746, %v1745
        %v1790 = vpack.c.b16 %v1748, %v1747
        %v1791 = vpack.c.b16 %v1750, %v1749
        %v1792 = vpack.c.b16 %v1752, %v1751
        %v1793 = vpack.c.b16 %v1754, %v1753
        %v1794 = vpack.c.b16 %v1756, %v1755
        %v1795 = vpack.c.b16 %v1758, %v1757
        %v1796 = vpack.c.b16 %v1760, %v1759
        %v1797 = vpack.c.b16 %v1762, %v1761
        %v1798 = vpack.c.b16 %v1764, %v1763
        %v1799 = vpack.c.b16 %v1766, %v1765
        %v1800 = vpack.c.b16 %v1768, %v1767
        %v1801 = vpack.c.b16 %v1770, %v1769
        %v1802 = vpack.c.b16 %v1772, %v1771
        %v1803 = vpack.c.b16 %v1774, %v1773
        %v1804 = vpack.c.b16 %v1776, %v1775
        %v1805 = vpack.c.b16 %v1778, %v1777
        %v1806 = vpack.c.b16 %v1780, %v1779
        %v1807 = vpack.c.b16 %v1782, %v1781
        %v1808 = vpack.c.b16 %v1784, %v1783
        %1833 = vmatprep.subr.bf16.mxu0 0
        %1834 = vmatpush1.bf16.msra.mxu0 %v1785
        %1835 = vmatprep.subr.bf16.mxu0 0
        %1836 = vmatpush1.bf16.msra.mxu0 %v1786
        %1837 = vmatprep.subr.bf16.mxu0 0
        %1838 = vmatpush1.bf16.msra.mxu0 %v1787
        %1839 = vmatprep.subr.bf16.mxu0 0
        %1840 = vmatpush1.bf16.msra.mxu0 %v1788
        %1841 = vmatprep.subr.bf16.mxu0 0
        %1842 = vmatpush1.bf16.msra.mxu0 %v1789
        %1843 = vmatprep.subr.bf16.mxu0 0
        %1844 = vmatpush1.bf16.msra.mxu0 %v1790
        %1845 = vmatprep.subr.bf16.mxu0 0
        %1846 = vmatpush1.bf16.msra.mxu0 %v1791
        %1847 = vmatprep.subr.bf16.mxu0 0
        %1848 = vmatpush1.bf16.msra.mxu0 %v1792
        %1849 = vmatprep.subr.bf16.mxu0 0
        %1850 = vmatpush1.bf16.msra.mxu0 %v1793
        %1851 = vmatprep.subr.bf16.mxu0 0
        %1852 = vmatpush1.bf16.msra.mxu0 %v1794
        %1853 = vmatprep.subr.bf16.mxu0 0
        %1854 = vmatpush1.bf16.msra.mxu0 %v1795
        %1855 = vmatprep.subr.bf16.mxu0 0
        %1856 = vmatpush1.bf16.msra.mxu0 %v1796
        %1857 = vmatprep.subr.bf16.mxu0 0
        %1858 = vmatpush1.bf16.msra.mxu0 %v1797
        %1859 = vmatprep.subr.bf16.mxu0 0
        %1860 = vmatpush1.bf16.msra.mxu0 %v1798
        %1861 = vmatprep.subr.bf16.mxu0 0
        %1862 = vmatpush1.bf16.msra.mxu0 %v1799
        %1863 = vmatprep.subr.bf16.mxu0 0
        %1864 = vmatpush1.bf16.msra.mxu0 %v1800
        %1865 = vmatprep.mubr.bf16.mxu0 %v1678
        %1866 = vmatmul.mubr.bf16.gmra.mrb[0].mxu0 %v1677
        %v1867 = vpop.f32.mrb[0].mxu0
        %v1868 = vadd.f32 0.0, %v1867
        %v1869 = vpop.f32.mrb[0].mxu0
        %v1870 = vpop.f32.mrb[0].mxu0
        %v1871 = vadd.f32 0.0, %v1870
        %v1872 = vpop.f32.mrb[0].mxu0
        %1873 = vmatprep.mubr.bf16.mxu0 %v1681
        %1874 = vmatmul.mubr.bf16.gmra.mrb[0].mxu0 %v1680
        %v1875 = vpop.f32.mrb[0].mxu0
        %v1876 = vadd.f32 0.0, %v1875
        %v1877 = vpop.f32.mrb[0].mxu0
        %v1878 = vpop.f32.mrb[0].mxu0
        %v1879 = vadd.f32 0.0, %v1878
        %v1880 = vpop.f32.mrb[0].mxu0
        %1881 = vmatprep.mubr.bf16.mxu0 %v1684
        %1882 = vmatmul.mubr.bf16.gmra.mrb[0].mxu0 %v1683
        %v1883 = vpop.f32.mrb[0].mxu0
        %v1884 = vadd.f32 0.0, %v1883
        %v1885 = vpop.f32.mrb[0].mxu0
        %v1886 = vpop.f32.mrb[0].mxu0
        %v1887 = vadd.f32 0.0, %v1886
        %v1888 = vpop.f32.mrb[0].mxu0
        %1889 = vmatprep.mubr.bf16.mxu0 %v1687
        %1890 = vmatmul.mubr.bf16.gmra.mrb[0].mxu0 %v1686
        %v1891 = vpop.f32.mrb[0].mxu0
        %v1892 = vadd.f32 0.0, %v1891
        %v1893 = vpop.f32.mrb[0].mxu0
        %v1894 = vpop.f32.mrb[0].mxu0
        %v1895 = vadd.f32 0.0, %v1894
        %v1896 = vpop.f32.mrb[0].mxu0
        %1897 = vdwg.mxu0
        %1898 = vmatprep.subr.bf16.mxu0 0
        %1899 = vmatpush1.bf16.msra.mxu0 %v1801
        %1900 = vmatprep.subr.bf16.mxu0 0
        %1901 = vmatpush1.bf16.msra.mxu0 %v1802
        %1902 = vmatprep.subr.bf16.mxu0 0
        %1903 = vmatpush1.bf16.msra.mxu0 %v1803
        %1904 = vmatprep.subr.bf16.mxu0 0
        %1905 = vmatpush1.bf16.msra.mxu0 %v1804
        %1906 = vmatprep.subr.bf16.mxu0 0
        %1907 = vmatpush1.bf16.msra.mxu0 %v1805
        %1908 = vmatprep.subr.bf16.mxu0 0
        %1909 = vmatpush1.bf16.msra.mxu0 %v1806
        %1910 = vmatprep.subr.bf16.mxu0 0
        %1911 = vmatpush1.bf16.msra.mxu0 %v1807
        %1912 = vmatprep.subr.bf16.mxu0 0
        %1913 = vmatpush1.bf16.msra.mxu0 %v1808
        %1914 = vmatprep.subr.bf16.mxu0 0
        %1915 = vmatpush1.bf16.msra.mxu0 0
        %1916 = vmatprep.subr.bf16.mxu0 0
        %1917 = vmatpush1.bf16.msra.mxu0 0
        %1918 = vmatprep.subr.bf16.mxu0 0
        %1919 = vmatpush1.bf16.msra.mxu0 0
        %1920 = vmatprep.subr.bf16.mxu0 0
        %1921 = vmatpush1.bf16.msra.mxu0 0
        %1922 = vmatprep.subr.bf16.mxu0 0
        %1923 = vmatpush1.bf16.msra.mxu0 0
        %1924 = vmatprep.subr.bf16.mxu0 0
        %1925 = vmatpush1.bf16.msra.mxu0 0
        %1926 = vmatprep.subr.bf16.mxu0 0
        %1927 = vmatpush1.bf16.msra.mxu0 0
        %1928 = vmatprep.subr.bf16.mxu0 0
        %1929 = vmatpush1.bf16.msra.mxu0 0
        %1930 = vmatprep.mubr.bf16.mxu0 0
        %1931 = vmatmul.mubr.bf16.gmra.mrb[0].mxu0 %v1679
        %v1932 = vpop.f32.mrb[0].mxu0
        %v1933 = vadd.f32 %v1868, %v1932
        %v1934 = vpop.f32.mrb[0].mxu0
        %v1935 = vpop.f32.mrb[0].mxu0
        %v1936 = vadd.f32 %v1871, %v1935
        %v1937 = vpop.f32.mrb[0].mxu0
        %1938 = vmatprep.mubr.bf16.mxu0 0
        %1939 = vmatmul.mubr.bf16.gmra.mrb[0].mxu0 %v1682
        %v1940 = vpop.f32.mrb[0].mxu0
        %v1941 = vadd.f32 %v1876, %v1940
        %v1942 = vpop.f32.mrb[0].mxu0
        %v1943 = vpop.f32.mrb[0].mxu0
        %v1944 = vadd.f32 %v1879, %v1943
        %v1945 = vpop.f32.mrb[0].mxu0
        %1946 = vmatprep.mubr.bf16.mxu0 0
        %1947 = vmatmul.mubr.bf16.gmra.mrb[0].mxu0 %v1685
        %v1948 = vpop.f32.mrb[0].mxu0
        %v1949 = vadd.f32 %v1884, %v1948
        %v1950 = vpop.f32.mrb[0].mxu0
        %v1951 = vpop.f32.mrb[0].mxu0
        %v1952 = vadd.f32 %v1887, %v1951
        %v1953 = vpop.f32.mrb[0].mxu0
        %1954 = vmatprep.mubr.bf16.mxu0 0
        %1955 = vmatmul.mubr.bf16.gmra.mrb[0].mxu0 %v1688
        %v1956 = vpop.f32.mrb[0].mxu0
        %v1957 = vadd.f32 %v1892, %v1956
        %v1958 = vpop.f32.mrb[0].mxu0
        %v1959 = vpop.f32.mrb[0].mxu0
        %v1960 = vadd.f32 %v1895, %v1959
        %v1961 = vpop.f32.mrb[0].mxu0
        %1962 = vdwg.mxu0
        %v2011 = vunpack.c.l.b16 %v1545
        %v2012 = vunpack.c.l.b16 %v1546
        %v2013 = vunpack.c.l.b16 %v1547
        %v2014 = vunpack.c.l.b16 %v1548
        %v2015 = vunpack.c.l.b16 %v1549
        %v2016 = vunpack.c.l.b16 %v1550
        %v2017 = vunpack.c.l.b16 %v1551
        %v2018 = vunpack.c.l.b16 %v1552
        %v2019 = vunpack.c.l.b16 %v1553
        %v2020 = vunpack.c.l.b16 %v1554
        %v2021 = vunpack.c.l.b16 %v1555
        %v2022 = vunpack.c.l.b16 %v1556
        %v2023 = vunpack.c.l.b16 %v1557
        %v2024 = vunpack.c.l.b16 %v1558
        %v2025 = vunpack.c.l.b16 %v1559
        %v2026 = vunpack.c.l.b16 %v1560
        %v2027 = vunpack.c.l.b16 %v1561
        %v2028 = vunpack.c.l.b16 %v1562
        %v2029 = vunpack.c.l.b16 %v1563
        %v2030 = vunpack.c.l.b16 %v1564
        %v2031 = vunpack.c.l.b16 %v1565
        %v2032 = vunpack.c.l.b16 %v1566
        %v2033 = vunpack.c.l.b16 %v1567
        %v2034 = vunpack.c.l.b16 %v1568
        %v2035 = vunpack.c.l.b16 %v1569
        %v2036 = vunpack.c.l.b16 %v1570
        %v2037 = vunpack.c.l.b16 %v1571
        %v2038 = vunpack.c.l.b16 %v1572
        %v2039 = vunpack.c.l.b16 %v1573
        %v2040 = vunpack.c.l.b16 %v1574
        %v2041 = vunpack.c.l.b16 %v1575
        %v2042 = vunpack.c.l.b16 %v1576
        %v2043 = vunpack.c.l.b16 %v1577
        %v2044 = vunpack.c.l.b16 %v1578
        %v2045 = vunpack.c.l.b16 %v1579
        %v2046 = vunpack.c.l.b16 %v1580
        %v2047 = vunpack.c.l.b16 %v1581
        %v2048 = vunpack.c.l.b16 %v1582
        %v2049 = vunpack.c.l.b16 %v1583
        %v2050 = vunpack.c.l.b16 %v1584
        %v2051 = vunpack.c.l.b16 %v1585
        %v2052 = vunpack.c.l.b16 %v1586
        %v2053 = vunpack.c.l.b16 %v1587
        %v2054 = vunpack.c.l.b16 %v1588
        %v2055 = vunpack.c.l.b16 %v1589
        %v2056 = vunpack.c.l.b16 %v1590
        %v2057 = vunpack.c.l.b16 %v1591
        %v2058 = vunpack.c.l.b16 %v1592
        %v2059 = vpack.c.b16 %v2012, %v2011
        %v2060 = vpack.c.b16 %v2014, %v2013
        %v2061 = vpack.c.b16 %v2016, %v2015
        %v2062 = vpack.c.b16 %v2018, %v2017
        %v2063 = vpack.c.b16 %v2020, %v2019
        %v2064 = vpack.c.b16 %v2022, %v2021
        %v2065 = vpack.c.b16 %v2024, %v2023
        %v2066 = vpack.c.b16 %v2026, %v2025
        %v2067 = vpack.c.b16 %v2028, %v2027
        %v2068 = vpack.c.b16 %v2030, %v2029
        %v2069 = vpack.c.b16 %v2032, %v2031
        %v2070 = vpack.c.b16 %v2034, %v2033
        %v2071 = vpack.c.b16 %v2036, %v2035
        %v2072 = vpack.c.b16 %v2038, %v2037
        %v2073 = vpack.c.b16 %v2040, %v2039
        %v2074 = vpack.c.b16 %v2042, %v2041
        %v2075 = vpack.c.b16 %v2044, %v2043
        %v2076 = vpack.c.b16 %v2046, %v2045
        %v2077 = vpack.c.b16 %v2048, %v2047
        %v2078 = vpack.c.b16 %v2050, %v2049
        %v2079 = vpack.c.b16 %v2052, %v2051
        %v2080 = vpack.c.b16 %v2054, %v2053
        %v2081 = vpack.c.b16 %v2056, %v2055
        %v2082 = vpack.c.b16 %v2058, %v2057
        %2107 = vmatprep.subr.bf16.mxu0 0
        %2108 = vmatpush1.bf16.msra.mxu0 %v2059
        %2109 = vmatprep.subr.bf16.mxu0 0
        %2110 = vmatpush1.bf16.msra.mxu0 %v2060
        %2111 = vmatprep.subr.bf16.mxu0 0
        %2112 = vmatpush1.bf16.msra.mxu0 %v2061
        %2113 = vmatprep.subr.bf16.mxu0 0
        %2114 = vmatpush1.bf16.msra.mxu0 %v2062
        %2115 = vmatprep.subr.bf16.mxu0 0
        %2116 = vmatpush1.bf16.msra.mxu0 %v2063
        %2117 = vmatprep.subr.bf16.mxu0 0
        %2118 = vmatpush1.bf16.msra.mxu0 %v2064
        %2119 = vmatprep.subr.bf16.mxu0 0
        %2120 = vmatpush1.bf16.msra.mxu0 %v2065
        %2121 = vmatprep.subr.bf16.mxu0 0
        %2122 = vmatpush1.bf16.msra.mxu0 %v2066
        %2123 = vmatprep.subr.bf16.mxu0 0
        %2124 = vmatpush1.bf16.msra.mxu0 %v2067
        %2125 = vmatprep.subr.bf16.mxu0 0
        %2126 = vmatpush1.bf16.msra.mxu0 %v2068
        %2127 = vmatprep.subr.bf16.mxu0 0
        %2128 = vmatpush1.bf16.msra.mxu0 %v2069
        %2129 = vmatprep.subr.bf16.mxu0 0
        %2130 = vmatpush1.bf16.msra.mxu0 %v2070
        %2131 = vmatprep.subr.bf16.mxu0 0
        %2132 = vmatpush1.bf16.msra.mxu0 %v2071
        %2133 = vmatprep.subr.bf16.mxu0 0
        %2134 = vmatpush1.bf16.msra.mxu0 %v2072
        %2135 = vmatprep.subr.bf16.mxu0 0
        %2136 = vmatpush1.bf16.msra.mxu0 %v2073
        %2137 = vmatprep.subr.bf16.mxu0 0
        %2138 = vmatpush1.bf16.msra.mxu0 %v2074
        %2139 = vmatprep.mubr.bf16.mxu0 %v1594
        %2140 = vmatmul.mubr.bf16.gmra.mrb[0].mxu0 %v1593
        %v2141 = vpop.f32.mrb[0].mxu0
        %v2142 = vadd.f32 %v1933, %v2141
        %v2143 = vpop.f32.mrb[0].mxu0
        %v2144 = vpop.f32.mrb[0].mxu0
        %v2145 = vadd.f32 %v1936, %v2144
        %v2146 = vpop.f32.mrb[0].mxu0
        %2147 = vmatprep.mubr.bf16.mxu0 %v1597
        %2148 = vmatmul.mubr.bf16.gmra.mrb[0].mxu0 %v1596
        %v2149 = vpop.f32.mrb[0].mxu0
        %v2150 = vadd.f32 %v1941, %v2149
        %v2151 = vpop.f32.mrb[0].mxu0
        %v2152 = vpop.f32.mrb[0].mxu0
        %v2153 = vadd.f32 %v1944, %v2152
        %v2154 = vpop.f32.mrb[0].mxu0
        %2155 = vmatprep.mubr.bf16.mxu0 %v1600
        %2156 = vmatmul.mubr.bf16.gmra.mrb[0].mxu0 %v1599
        %v2157 = vpop.f32.mrb[0].mxu0
        %v2158 = vadd.f32 %v1949, %v2157
        %v2159 = vpop.f32.mrb[0].mxu0
        %v2160 = vpop.f32.mrb[0].mxu0
        %v2161 = vadd.f32 %v1952, %v2160
        %v2162 = vpop.f32.mrb[0].mxu0
        %2163 = vmatprep.mubr.bf16.mxu0 %v1603
        %2164 = vmatmul.mubr.bf16.gmra.mrb[0].mxu0 %v1602
        %v2165 = vpop.f32.mrb[0].mxu0
        %v2166 = vadd.f32 %v1957, %v2165
        %v2167 = vpop.f32.mrb[0].mxu0
        %v2168 = vpop.f32.mrb[0].mxu0
        %v2169 = vadd.f32 %v1960, %v2168
        %v2170 = vpop.f32.mrb[0].mxu0
        %2171 = vdwg.mxu0
        %2172 = vmatprep.subr.bf16.mxu0 0
        %2173 = vmatpush1.bf16.msra.mxu0 %v2075
        %2174 = vmatprep.subr.bf16.mxu0 0
        %2175 = vmatpush1.bf16.msra.mxu0 %v2076
        %2176 = vmatprep.subr.bf16.mxu0 0
        %2177 = vmatpush1.bf16.msra.mxu0 %v2077
        %2178 = vmatprep.subr.bf16.mxu0 0
        %2179 = vmatpush1.bf16.msra.mxu0 %v2078
        %2180 = vmatprep.subr.bf16.mxu0 0
        %2181 = vmatpush1.bf16.msra.mxu0 %v2079
        %2182 = vmatprep.subr.bf16.mxu0 0
        %2183 = vmatpush1.bf16.msra.mxu0 %v2080
        %2184 = vmatprep.subr.bf16.mxu0 0
        %2185 = vmatpush1.bf16.msra.mxu0 %v2081
        %2186 = vmatprep.subr.bf16.mxu0 0
        %2187 = vmatpush1.bf16.msra.mxu0 %v2082
        %2188 = vmatprep.subr.bf16.mxu0 0
        %2189 = vmatpush1.bf16.msra.mxu0 0
        %2190 = vmatprep.subr.bf16.mxu0 0
        %2191 = vmatpush1.bf16.msra.mxu0 0
        %2192 = vmatprep.subr.bf16.mxu0 0
        %2193 = vmatpush1.bf16.msra.mxu0 0
        %2194 = vmatprep.subr.bf16.mxu0 0
        %2195 = vmatpush1.bf16.msra.mxu0 0
        %2196 = vmatprep.subr.bf16.mxu0 0
        %2197 = vmatpush1.bf16.msra.mxu0 0
        %2198 = vmatprep.subr.bf16.mxu0 0
        %2199 = vmatpush1.bf16.msra.mxu0 0
        %2200 = vmatprep.subr.bf16.mxu0 0
        %2201 = vmatpush1.bf16.msra.mxu0 0
        %2202 = vmatprep.subr.bf16.mxu0 0
        %2203 = vmatpush1.bf16.msra.mxu0 0
        %2204 = vmatprep.mubr.bf16.mxu0 0
        %2205 = vmatmul.mubr.bf16.gmra.mrb[0].mxu0 %v1595
        %v2206 = vpop.f32.mrb[0].mxu0
        %v2207 = vadd.f32 %v2142, %v2206
        %v2208 = vpop.f32.mrb[0].mxu0
        %v2209 = vpop.f32.mrb[0].mxu0
        %v2210 = vadd.f32 %v2145, %v2209
        %v2211 = vpop.f32.mrb[0].mxu0
        %2212 = vmatprep.mubr.bf16.mxu0 0
        %2213 = vmatmul.mubr.bf16.gmra.mrb[0].mxu0 %v1598
        %v2214 = vpop.f32.mrb[0].mxu0
        %v2215 = vadd.f32 %v2150, %v2214
        %v2216 = vpop.f32.mrb[0].mxu0
        %v2217 = vpop.f32.mrb[0].mxu0
        %v2218 = vadd.f32 %v2153, %v2217
        %v2219 = vpop.f32.mrb[0].mxu0
        %2220 = vmatprep.mubr.bf16.mxu0 0
        %2221 = vmatmul.mubr.bf16.gmra.mrb[0].mxu0 %v1601
        %v2222 = vpop.f32.mrb[0].mxu0
        %v2223 = vadd.f32 %v2158, %v2222
        %v2224 = vpop.f32.mrb[0].mxu0
        %v2225 = vpop.f32.mrb[0].mxu0
        %v2226 = vadd.f32 %v2161, %v2225
        %v2227 = vpop.f32.mrb[0].mxu0
        %2228 = vmatprep.mubr.bf16.mxu0 0
        %2229 = vmatmul.mubr.bf16.gmra.mrb[0].mxu0 %v1604
        %v2230 = vpop.f32.mrb[0].mxu0
        %v2231 = vadd.f32 %v2166, %v2230
        %v2232 = vpop.f32.mrb[0].mxu0
        %v2233 = vpop.f32.mrb[0].mxu0
        %v2234 = vadd.f32 %v2169, %v2233
        %v2235 = vpop.f32.mrb[0].mxu0
        %2236 = vdwg.mxu0
        %v2237 = vld [vmem:[%s1075] sm:$0xff]
        %v2238 = vld [vmem:[%s1075 + $0x10] sm:$0xff]
        %v2239 = vld [vmem:[%s1075 + $0x20] sm:$0xff]
        %v2240 = vld [vmem:[%s1075 + $0x30] sm:$0xff]
        %v2241 = vld [vmem:[%s1075 + $0x40] sm:$0xff]
        %v2242 = vld [vmem:[%s1075 + $0x50] sm:$0xff]
        %v2243 = vld [vmem:[%s1075 + $0x60] sm:$0xff]
        %v2244 = vld [vmem:[%s1075 + $0x70] sm:$0xff]
        %v2245 = vld [vmem:[%s1075 + $0x1] sm:$0xff]
        %v2246 = vld [vmem:[%s1075 + $0x11] sm:$0xff]
        %v2247 = vld [vmem:[%s1075 + $0x21] sm:$0xff]
        %v2248 = vld [vmem:[%s1075 + $0x31] sm:$0xff]
        %v2249 = vld [vmem:[%s1075 + $0x41] sm:$0xff]
        %v2250 = vld [vmem:[%s1075 + $0x51] sm:$0xff]
        %v2251 = vld [vmem:[%s1075 + $0x61] sm:$0xff]
        %v2252 = vld [vmem:[%s1075 + $0x71] sm:$0xff]
        %v2253 = vld [vmem:[%s1075 + $0x2] sm:$0xff]
        %v2254 = vld [vmem:[%s1075 + $0x12] sm:$0xff]
        %v2255 = vld [vmem:[%s1075 + $0x22] sm:$0xff]
        %v2256 = vld [vmem:[%s1075 + $0x32] sm:$0xff]
        %v2257 = vld [vmem:[%s1075 + $0x42] sm:$0xff]
        %v2258 = vld [vmem:[%s1075 + $0x52] sm:$0xff]
        %v2259 = vld [vmem:[%s1075 + $0x62] sm:$0xff]
        %v2260 = vld [vmem:[%s1075 + $0x72] sm:$0xff]
        %v2261 = vld [vmem:[#allocation8 + $0x180] sm:$0xf]
        %v2262 = vld [vmem:[#allocation8 + $0x184] sm:$0xf]
        %v2263 = vld [vmem:[#allocation8 + $0x188] sm:$0xf]
        %v2264 = vld [vmem:[#allocation8 + $0x18c] sm:$0xf]
        %v2265 = vld [vmem:[#allocation8 + $0x190] sm:$0xf]
        %v2266 = vld [vmem:[#allocation8 + $0x194] sm:$0xf]
        %v2267 = vld [vmem:[#allocation8 + $0x198] sm:$0xf]
        %v2268 = vld [vmem:[#allocation8 + $0x19c] sm:$0xf]
        %v2269 = vld [vmem:[#allocation8 + $0x1a0] sm:$0xf]
        %v2270 = vld [vmem:[#allocation8 + $0x1a4] sm:$0xf]
        %v2271 = vld [vmem:[#allocation8 + $0x1a8] sm:$0xf]
        %v2272 = vld [vmem:[#allocation8 + $0x1ac] sm:$0xf]
        %v2273 = vld [vmem:[#allocation8 + $0x1b0] sm:$0xf]
        %v2274 = vld [vmem:[#allocation8 + $0x1b4] sm:$0xf]
        %v2275 = vld [vmem:[#allocation8 + $0x1b8] sm:$0xf]
        %v2276 = vld [vmem:[#allocation8 + $0x1bc] sm:$0xf]
        %v2277 = vld [vmem:[#allocation8 + $0x1c0] sm:$0xf]
        %v2278 = vld [vmem:[#allocation8 + $0x1c4] sm:$0xf]
        %v2279 = vld [vmem:[#allocation8 + $0x1c8] sm:$0xf]
        %v2280 = vld [vmem:[#allocation8 + $0x1cc] sm:$0xf]
        %v2281 = vld [vmem:[#allocation8 + $0x1d0] sm:$0xf]
        %v2282 = vld [vmem:[#allocation8 + $0x1d4] sm:$0xf]
        %v2283 = vld [vmem:[#allocation8 + $0x1d8] sm:$0xf]
        %v2284 = vld [vmem:[#allocation8 + $0x1dc] sm:$0xf]
        %v2285 = vld [vmem:[#allocation8 + $0x1e0] sm:$0xf]
        %v2286 = vld [vmem:[#allocation8 + $0x1e4] sm:$0xf]
        %v2287 = vld [vmem:[#allocation8 + $0x1e8] sm:$0xf]
        %v2288 = vld [vmem:[#allocation8 + $0x1ec] sm:$0xf]
        %v2289 = vld [vmem:[#allocation8 + $0x1f0] sm:$0xf]
        %v2290 = vld [vmem:[#allocation8 + $0x1f4] sm:$0xf]
        %v2291 = vld [vmem:[#allocation8 + $0x1f8] sm:$0xf]
        %v2292 = vld [vmem:[#allocation8 + $0x1fc] sm:$0xf]
        %v2293 = vld [vmem:[#allocation8 + $0x200] sm:$0xf]
        %v2294 = vld [vmem:[#allocation8 + $0x204] sm:$0xf]
        %v2295 = vld [vmem:[#allocation8 + $0x208] sm:$0xf]
        %v2296 = vld [vmem:[#allocation8 + $0x20c] sm:$0xf]
        %v2297 = vld [vmem:[#allocation8 + $0x210] sm:$0xf]
        %v2298 = vld [vmem:[#allocation8 + $0x214] sm:$0xf]
        %v2299 = vld [vmem:[#allocation8 + $0x218] sm:$0xf]
        %v2300 = vld [vmem:[#allocation8 + $0x21c] sm:$0xf]
        %v2301 = vld [vmem:[#allocation8 + $0x220] sm:$0xf]
        %v2302 = vld [vmem:[#allocation8 + $0x224] sm:$0xf]
        %v2303 = vld [vmem:[#allocation8 + $0x228] sm:$0xf]
        %v2304 = vld [vmem:[#allocation8 + $0x22c] sm:$0xf]
        %v2305 = vld [vmem:[#allocation8 + $0x230] sm:$0xf]
        %v2306 = vld [vmem:[#allocation8 + $0x234] sm:$0xf]
        %v2307 = vld [vmem:[#allocation8 + $0x238] sm:$0xf]
        %v2308 = vld [vmem:[#allocation8 + $0x23c] sm:$0xf]
        %v2309 = vpack.c.bf16 %v2238, %v2237
        %v2310 = vpack.c.bf16 %v2246, %v2245
        %v2311 = vpack.c.bf16 %v2254, %v2253
        %v2312 = vpack.c.bf16 %v2240, %v2239
        %v2313 = vpack.c.bf16 %v2248, %v2247
        %v2314 = vpack.c.bf16 %v2256, %v2255
        %v2315 = vpack.c.bf16 %v2242, %v2241
        %v2316 = vpack.c.bf16 %v2250, %v2249
        %v2317 = vpack.c.bf16 %v2258, %v2257
        %v2318 = vpack.c.bf16 %v2244, %v2243
        %v2319 = vpack.c.bf16 %v2252, %v2251
        %v2320 = vpack.c.bf16 %v2260, %v2259
        %v2369 = vunpack.c.l.b16 %v2261
        %v2370 = vunpack.c.l.b16 %v2262
        %v2371 = vunpack.c.l.b16 %v2263
        %v2372 = vunpack.c.l.b16 %v2264
        %v2373 = vunpack.c.l.b16 %v2265
        %v2374 = vunpack.c.l.b16 %v2266
        %v2375 = vunpack.c.l.b16 %v2267
        %v2376 = vunpack.c.l.b16 %v2268
        %v2377 = vunpack.c.l.b16 %v2269
        %v2378 = vunpack.c.l.b16 %v2270
        %v2379 = vunpack.c.l.b16 %v2271
        %v2380 = vunpack.c.l.b16 %v2272
        %v2381 = vunpack.c.l.b16 %v2273
        %v2382 = vunpack.c.l.b16 %v2274
        %v2383 = vunpack.c.l.b16 %v2275
        %v2384 = vunpack.c.l.b16 %v2276
        %v2385 = vunpack.c.l.b16 %v2277
        %v2386 = vunpack.c.l.b16 %v2278
        %v2387 = vunpack.c.l.b16 %v2279
        %v2388 = vunpack.c.l.b16 %v2280
        %v2389 = vunpack.c.l.b16 %v2281
        %v2390 = vunpack.c.l.b16 %v2282
        %v2391 = vunpack.c.l.b16 %v2283
        %v2392 = vunpack.c.l.b16 %v2284
        %v2393 = vunpack.c.l.b16 %v2285
        %v2394 = vunpack.c.l.b16 %v2286
        %v2395 = vunpack.c.l.b16 %v2287
        %v2396 = vunpack.c.l.b16 %v2288
        %v2397 = vunpack.c.l.b16 %v2289
        %v2398 = vunpack.c.l.b16 %v2290
        %v2399 = vunpack.c.l.b16 %v2291
        %v2400 = vunpack.c.l.b16 %v2292
        %v2401 = vunpack.c.l.b16 %v2293
        %v2402 = vunpack.c.l.b16 %v2294
        %v2403 = vunpack.c.l.b16 %v2295
        %v2404 = vunpack.c.l.b16 %v2296
        %v2405 = vunpack.c.l.b16 %v2297
        %v2406 = vunpack.c.l.b16 %v2298
        %v2407 = vunpack.c.l.b16 %v2299
        %v2408 = vunpack.c.l.b16 %v2300
        %v2409 = vunpack.c.l.b16 %v2301
        %v2410 = vunpack.c.l.b16 %v2302
        %v2411 = vunpack.c.l.b16 %v2303
        %v2412 = vunpack.c.l.b16 %v2304
        %v2413 = vunpack.c.l.b16 %v2305
        %v2414 = vunpack.c.l.b16 %v2306
        %v2415 = vunpack.c.l.b16 %v2307
        %v2416 = vunpack.c.l.b16 %v2308
        %v2417 = vpack.c.b16 %v2370, %v2369
        %v2418 = vpack.c.b16 %v2372, %v2371
        %v2419 = vpack.c.b16 %v2374, %v2373
        %v2420 = vpack.c.b16 %v2376, %v2375
        %v2421 = vpack.c.b16 %v2378, %v2377
        %v2422 = vpack.c.b16 %v2380, %v2379
        %v2423 = vpack.c.b16 %v2382, %v2381
        %v2424 = vpack.c.b16 %v2384, %v2383
        %v2425 = vpack.c.b16 %v2386, %v2385
        %v2426 = vpack.c.b16 %v2388, %v2387
        %v2427 = vpack.c.b16 %v2390, %v2389
        %v2428 = vpack.c.b16 %v2392, %v2391
        %v2429 = vpack.c.b16 %v2394, %v2393
        %v2430 = vpack.c.b16 %v2396, %v2395
        %v2431 = vpack.c.b16 %v2398, %v2397
        %v2432 = vpack.c.b16 %v2400, %v2399
        %v2433 = vpack.c.b16 %v2402, %v2401
        %v2434 = vpack.c.b16 %v2404, %v2403
        %v2435 = vpack.c.b16 %v2406, %v2405
        %v2436 = vpack.c.b16 %v2408, %v2407
        %v2437 = vpack.c.b16 %v2410, %v2409
        %v2438 = vpack.c.b16 %v2412, %v2411
        %v2439 = vpack.c.b16 %v2414, %v2413
        %v2440 = vpack.c.b16 %v2416, %v2415
        %2465 = vmatprep.subr.bf16.mxu0 0
        %2466 = vmatpush1.bf16.msra.mxu0 %v2417
        %2467 = vmatprep.subr.bf16.mxu0 0
        %2468 = vmatpush1.bf16.msra.mxu0 %v2418
        %2469 = vmatprep.subr.bf16.mxu0 0
        %2470 = vmatpush1.bf16.msra.mxu0 %v2419
        %2471 = vmatprep.subr.bf16.mxu0 0
        %2472 = vmatpush1.bf16.msra.mxu0 %v2420
        %2473 = vmatprep.subr.bf16.mxu0 0
        %2474 = vmatpush1.bf16.msra.mxu0 %v2421
        %2475 = vmatprep.subr.bf16.mxu0 0
        %2476 = vmatpush1.bf16.msra.mxu0 %v2422
        %2477 = vmatprep.subr.bf16.mxu0 0
        %2478 = vmatpush1.bf16.msra.mxu0 %v2423
        %2479 = vmatprep.subr.bf16.mxu0 0
        %2480 = vmatpush1.bf16.msra.mxu0 %v2424
        %2481 = vmatprep.subr.bf16.mxu0 0
        %2482 = vmatpush1.bf16.msra.mxu0 %v2425
        %2483 = vmatprep.subr.bf16.mxu0 0
        %2484 = vmatpush1.bf16.msra.mxu0 %v2426
        %2485 = vmatprep.subr.bf16.mxu0 0
        %2486 = vmatpush1.bf16.msra.mxu0 %v2427
        %2487 = vmatprep.subr.bf16.mxu0 0
        %2488 = vmatpush1.bf16.msra.mxu0 %v2428
        %2489 = vmatprep.subr.bf16.mxu0 0
        %2490 = vmatpush1.bf16.msra.mxu0 %v2429
        %2491 = vmatprep.subr.bf16.mxu0 0
        %2492 = vmatpush1.bf16.msra.mxu0 %v2430
        %2493 = vmatprep.subr.bf16.mxu0 0
        %2494 = vmatpush1.bf16.msra.mxu0 %v2431
        %2495 = vmatprep.subr.bf16.mxu0 0
        %2496 = vmatpush1.bf16.msra.mxu0 %v2432
        %2497 = vmatprep.mubr.bf16.mxu0 %v2310
        %2498 = vmatmul.mubr.bf16.gmra.mrb[0].mxu0 %v2309
        %v2499 = vpop.f32.mrb[0].mxu0
        %v2500 = vadd.f32 0.0, %v2499
        %v2501 = vpop.f32.mrb[0].mxu0
        %v2502 = vpop.f32.mrb[0].mxu0
        %v2503 = vadd.f32 0.0, %v2502
        %v2504 = vpop.f32.mrb[0].mxu0
        %2505 = vmatprep.mubr.bf16.mxu0 %v2313
        %2506 = vmatmul.mubr.bf16.gmra.mrb[0].mxu0 %v2312
        %v2507 = vpop.f32.mrb[0].mxu0
        %v2508 = vadd.f32 0.0, %v2507
        %v2509 = vpop.f32.mrb[0].mxu0
        %v2510 = vpop.f32.mrb[0].mxu0
        %v2511 = vadd.f32 0.0, %v2510
        %v2512 = vpop.f32.mrb[0].mxu0
        %2513 = vmatprep.mubr.bf16.mxu0 %v2316
        %2514 = vmatmul.mubr.bf16.gmra.mrb[0].mxu0 %v2315
        %v2515 = vpop.f32.mrb[0].mxu0
        %v2516 = vadd.f32 0.0, %v2515
        %v2517 = vpop.f32.mrb[0].mxu0
        %v2518 = vpop.f32.mrb[0].mxu0
        %v2519 = vadd.f32 0.0, %v2518
        %v2520 = vpop.f32.mrb[0].mxu0
        %2521 = vmatprep.mubr.bf16.mxu0 %v2319
        %2522 = vmatmul.mubr.bf16.gmra.mrb[0].mxu0 %v2318
        %v2523 = vpop.f32.mrb[0].mxu0
        %v2524 = vadd.f32 0.0, %v2523
        %v2525 = vpop.f32.mrb[0].mxu0
        %v2526 = vpop.f32.mrb[0].mxu0
        %v2527 = vadd.f32 0.0, %v2526
        %v2528 = vpop.f32.mrb[0].mxu0
        %2529 = vdwg.mxu0
        %2530 = vmatprep.subr.bf16.mxu0 0
        %2531 = vmatpush1.bf16.msra.mxu0 %v2433
        %2532 = vmatprep.subr.bf16.mxu0 0
        %2533 = vmatpush1.bf16.msra.mxu0 %v2434
        %2534 = vmatprep.subr.bf16.mxu0 0
        %2535 = vmatpush1.bf16.msra.mxu0 %v2435
        %2536 = vmatprep.subr.bf16.mxu0 0
        %2537 = vmatpush1.bf16.msra.mxu0 %v2436
        %2538 = vmatprep.subr.bf16.mxu0 0
        %2539 = vmatpush1.bf16.msra.mxu0 %v2437
        %2540 = vmatprep.subr.bf16.mxu0 0
        %2541 = vmatpush1.bf16.msra.mxu0 %v2438
        %2542 = vmatprep.subr.bf16.mxu0 0
        %2543 = vmatpush1.bf16.msra.mxu0 %v2439
        %2544 = vmatprep.subr.bf16.mxu0 0
        %2545 = vmatpush1.bf16.msra.mxu0 %v2440
        %2546 = vmatprep.subr.bf16.mxu0 0
        %2547 = vmatpush1.bf16.msra.mxu0 0
        %2548 = vmatprep.subr.bf16.mxu0 0
        %2549 = vmatpush1.bf16.msra.mxu0 0
        %2550 = vmatprep.subr.bf16.mxu0 0
        %2551 = vmatpush1.bf16.msra.mxu0 0
        %2552 = vmatprep.subr.bf16.mxu0 0
        %2553 = vmatpush1.bf16.msra.mxu0 0
        %2554 = vmatprep.subr.bf16.mxu0 0
        %2555 = vmatpush1.bf16.msra.mxu0 0
        %2556 = vmatprep.subr.bf16.mxu0 0
        %2557 = vmatpush1.bf16.msra.mxu0 0
        %2558 = vmatprep.subr.bf16.mxu0 0
        %2559 = vmatpush1.bf16.msra.mxu0 0
        %2560 = vmatprep.subr.bf16.mxu0 0
        %2561 = vmatpush1.bf16.msra.mxu0 0
        %2562 = vmatprep.mubr.bf16.mxu0 0
        %2563 = vmatmul.mubr.bf16.gmra.mrb[0].mxu0 %v2311
        %v2564 = vpop.f32.mrb[0].mxu0
        %v2565 = vadd.f32 %v2500, %v2564
        %v2566 = vpop.f32.mrb[0].mxu0
        %v2567 = vpop.f32.mrb[0].mxu0
        %v2568 = vadd.f32 %v2503, %v2567
        %v2569 = vpop.f32.mrb[0].mxu0
        %2570 = vmatprep.mubr.bf16.mxu0 0
        %2571 = vmatmul.mubr.bf16.gmra.mrb[0].mxu0 %v2314
        %v2572 = vpop.f32.mrb[0].mxu0
        %v2573 = vadd.f32 %v2508, %v2572
        %v2574 = vpop.f32.mrb[0].mxu0
        %v2575 = vpop.f32.mrb[0].mxu0
        %v2576 = vadd.f32 %v2511, %v2575
        %v2577 = vpop.f32.mrb[0].mxu0
        %2578 = vmatprep.mubr.bf16.mxu0 0
        %2579 = vmatmul.mubr.bf16.gmra.mrb[0].mxu0 %v2317
        %v2580 = vpop.f32.mrb[0].mxu0
        %v2581 = vadd.f32 %v2516, %v2580
        %v2582 = vpop.f32.mrb[0].mxu0
        %v2583 = vpop.f32.mrb[0].mxu0
        %v2584 = vadd.f32 %v2519, %v2583
        %v2585 = vpop.f32.mrb[0].mxu0
        %2586 = vmatprep.mubr.bf16.mxu0 0
        %2587 = vmatmul.mubr.bf16.gmra.mrb[0].mxu0 %v2320
        %v2588 = vpop.f32.mrb[0].mxu0
        %v2589 = vadd.f32 %v2524, %v2588
        %v2590 = vpop.f32.mrb[0].mxu0
        %v2591 = vpop.f32.mrb[0].mxu0
        %v2592 = vadd.f32 %v2527, %v2591
        %v2593 = vpop.f32.mrb[0].mxu0
        %2594 = vdwg.mxu0
        %v2595 = vadd.f32 %v2207, %v2565
        %v2596 = vadd.f32 %v2210, %v2568
        %v2597 = vadd.f32 %v2215, %v2573
        %v2598 = vadd.f32 %v2218, %v2576
        %v2599 = vadd.f32 %v2223, %v2581
        %v2600 = vadd.f32 %v2226, %v2584
        %v2601 = vadd.f32 %v2231, %v2589
        %v2602 = vadd.f32 %v2234, %v2592
        %v2603 = vld [vmem:[%s4] sm:$0x1]
        %v2605 = vlaneseq
        %v2606 = vshrl.u32 %v2605, 7
        %v2607 = vsub.s32 0, %v2606
        %v2608 = vrot.slane %v2603, %v2607
        %v2610 = vadd.f32 %v2595, %v2608
        %v2611 = vadd.f32 %v2596, %v2608
        %v2612 = vadd.f32 %v2597, %v2608
        %v2613 = vadd.f32 %v2598, %v2608
        %v2614 = vadd.f32 %v2599, %v2608
        %v2615 = vadd.f32 %v2600, %v2608
        %v2616 = vadd.f32 %v2601, %v2608
        %v2617 = vadd.f32 %v2602, %v2608
        %v2618 = vld [vmem:[%s237] sm:$0xff]
        %v2619 = vld [vmem:[%s237 + $0x8] sm:$0xff]
        %v2620 = vld [vmem:[%s237 + $0x10] sm:$0xff]
        %v2621 = vld [vmem:[%s237 + $0x18] sm:$0xff]
        %v2622 = vld [vmem:[%s237 + $0x20] sm:$0xff]
        %v2623 = vld [vmem:[%s237 + $0x28] sm:$0xff]
        %v2624 = vld [vmem:[%s237 + $0x30] sm:$0xff]
        %v2625 = vld [vmem:[%s237 + $0x38] sm:$0xff]
        %v2626 = vadd.f32 %v2610, %v2618
        %v2627 = vadd.f32 %v2611, %v2619
        %v2628 = vadd.f32 %v2612, %v2620
        %v2629 = vadd.f32 %v2613, %v2621
        %v2630 = vadd.f32 %v2614, %v2622
        %v2631 = vadd.f32 %v2615, %v2623
        %v2632 = vadd.f32 %v2616, %v2624
        %v2633 = vadd.f32 %v2617, %v2625
        %v2634 = vmax.f32 %v2626, 0.0
        %v2635 = vmax.f32 %v2627, 0.0
        %v2636 = vmax.f32 %v2628, 0.0
        %v2637 = vmax.f32 %v2629, 0.0
        %v2638 = vmax.f32 %v2630, 0.0
        %v2639 = vmax.f32 %v2631, 0.0
        %v2640 = vmax.f32 %v2632, 0.0
        %v2641 = vmax.f32 %v2633, 0.0
        %2642 = vst [vmem:[%s271] sm:$0xff] %v2634
        %2643 = vst [vmem:[%s271 + $0x8] sm:$0xff] %v2635
        %2644 = vst [vmem:[%s271 + $0x10] sm:$0xff] %v2636
        %2645 = vst [vmem:[%s271 + $0x18] sm:$0xff] %v2637
        %2646 = vst [vmem:[%s271 + $0x20] sm:$0xff] %v2638
        %2647 = vst [vmem:[%s271 + $0x28] sm:$0xff] %v2639
        %2648 = vst [vmem:[%s271 + $0x30] sm:$0xff] %v2640
        %2649 = vst [vmem:[%s271 + $0x38] sm:$0xff] %v2641
        %s2650 = sand.u32 %s141, 1
        %s2651 = scalar_lea.sflag [#allocation5], %s2650
        %s2652 = sand.u32 %s141, 1
        %s2653 = smul.addr %s2652, 64
        %s2654 = scalar_lea.vmem [#allocation9], %s2653
        // Predicated region
        $region53: #{tpu_custom_call.1} parent=39 // pred_check
          %p2655 = pneg %p151
        $region54: #{tpu_custom_call.1} parent=39 // pred_check_branch
          %2657 = sbr.rel (%p2655) target = $region56
        $region55: #{tpu_custom_call.1} parent=39 // pred_region
          %s2659 = ssub.s32 1024, 1024
          %2660 = vsyncadd %s2651, %s2659
          %s2661 = smul.addr %s23, 8
          %s2662 = smul.addr %s2661, 128
          %s2663 = scalar_lea.hbm %s5, %s2662
          %s2664 = sshll.u32 %s2654, 4
          %s2665 = int_to_ptr.vmem [resolvable:$true] %s2664
          %2670 = dma.vmem_to_hbm [thread:$0]  %s2665, 1024, %s2663, %s2651, 128, 128, 8
        $region56: #{tpu_custom_call.1} parent=39 // pred_fallthru
          _
      $region40: #{tpu_custom_call.1} parent=5 // pred_fallthru
        _
      %p2671 = scmp.le.s32.totalorder 2, %s18
      // Predicated region
      $region57: #{tpu_custom_call.1} parent=5 // pred_check
        %p2672 = pneg %p2671
      $region58: #{tpu_custom_call.1} parent=5 // pred_check_branch
        %2674 = sbr.rel (%p2672) target = $region60
      $region59: #{tpu_custom_call.1} parent=5 // pred_region
        %s2675 = ssub.s32 %s18, 2
        // Predicated region
        $region61: #{tpu_custom_call.1} parent=59 // pred_check
          %p2676 = pneg %p157
        $region62: #{tpu_custom_call.1} parent=59 // pred_check_branch
          %2678 = sbr.rel (%p2676) target = $region64
        $region63: #{tpu_custom_call.1} parent=59 // pred_region
          %s2679 = sand.u32 %s142, 1
          %s2680 = scalar_lea.sflag [#allocation5], %s2679
          %s2681 = sand.u32 %s142, 1
          %s2682 = smul.addr %s2681, 64
          %s2683 = scalar_lea.vmem [#allocation9], %s2682
          %2684 = dma.done %s2680, 1024
        $region64: #{tpu_custom_call.1} parent=59 // pred_fallthru
          _
      $region60: #{tpu_custom_call.1} parent=5 // pred_fallthru
        _
    $region6: #{tpu_custom_call.1} parent=1 // loop_footer
      %s22 = sadd.s32 1, %s18
    $region7: #{tpu_custom_call.1} parent=1 // loop_footer_branch
      %17 = sbr.rel target = $region3
    $region8: #{tpu_custom_call.1} parent=1 // loop_exit
      _
    %2685 = vsyncpa [#allocation4], 1
    %s2686 = scalar_lea.sflag [#allocation4], 1
    %2687 = vsyncpa %s2686, 1
    %2688 = vsyncpa [#allocation7], 1
    %2689 = vsyncpa [#allocation5], 1
    %s2690 = scalar_lea.sflag [#allocation5], 1
    %2691 = vsyncpa %s2690, 1

</llo_original>
